<compile_context>
chip_gen: v6e
topology: v6e:2x2x1
jax: 0.10.0
libtpu: 0.0.40
codegen_flags: <defaults>
</compile_context>

<pallas_src>
import functools

import jax
import jax.numpy as jnp
from jax import lax
from jax.experimental import pallas as pl
from jax.experimental.pallas import tpu as pltpu


def transformer_block_kernel(
    x_ref, alphas_ref, vecs_ref,
    wq_ref, wk_ref, wv_ref, wproj_ref,
    w1_ref, b1_ref, w2_ref,
    out_ref,
    k_scr, v_scr,
    *, num_heads, q_tile,
):
    f32 = jnp.float32
    bf16 = jnp.bfloat16

    S = x_ref.shape[1]
    D = x_ref.shape[2]
    H = num_heads
    hd = D // H
    TQ = q_tile
    scale = float(hd) ** -0.5

    qi = pl.program_id(1)

    alpha1 = alphas_ref[0]          # scalars live in SMEM
    alpha2 = alphas_ref[1]

    vecs = vecs_ref[...]            # (9, D) f32, packed 1-D parameters
    gamma1, beta1 = vecs[0:1], vecs[1:2]
    bq, bk, bv = vecs[2:3], vecs[3:4], vecs[4:5]
    bproj = vecs[5:6]
    gamma2, beta2 = vecs[6:7], vecs[7:8]
    b2 = vecs[8:9]

    # ---- K/V: computed once per batch (qi == 0), cached head-split in VMEM
    # scratch and reused by every later q-tile of the same batch.  Valid only
    # because the qi axis is "arbitrary" (not megacore-sharded).
    @pl.when(qi == 0)
    def _():
        x_kv = x_ref[0]                                              # (S, D) f32
        nkv = (gamma1 * jnp.tanh(alpha1 * x_kv) + beta1).astype(bf16)
        k2 = jnp.dot(nkv, wk_ref[...], preferred_element_type=f32) + bk   # (S, D)
        v2 = jnp.dot(nkv, wv_ref[...], preferred_element_type=f32) + bv   # (S, D)
        k_scr[...] = jnp.swapaxes(k2.reshape(S, H, hd), 0, 1).astype(bf16)  # (H,S,hd)
        v_scr[...] = jnp.swapaxes(v2.reshape(S, H, hd), 0, 1).astype(bf16)

    # ---- q rows for this tile, sliced from the resident (S, D) block ----
    qstart = pl.multiple_of(qi * TQ, TQ)
    x_q = x_ref[0, pl.ds(qstart, TQ), :]                             # (TQ, D) f32

    # ---- attn_norm (DyT, f32) + Q projection (bf16 MXU, f32 accumulate) ----
    nq = (gamma1 * jnp.tanh(alpha1 * x_q) + beta1).astype(bf16)
    q2 = jnp.dot(nq, wq_ref[...], preferred_element_type=f32) + bq   # (TQ, D)
    q = jnp.swapaxes(q2.reshape(TQ, H, hd), 0, 1) * scale            # (H, TQ, hd)

    # ---- attention: all heads in one batched matmul ----
    s = jnp.einsum("hqd,hkd->hqk", q.astype(bf16), k_scr[...],
                   preferred_element_type=f32)                       # (H, TQ, S)
    s = s - jnp.max(s, axis=-1, keepdims=True)
    p = jnp.exp(s)
    denom = jnp.sum(p, axis=-1, keepdims=True)
    # NOTE: approx reciprocal -> softmax rows sum to 1 only approximately.
    p = p * pl.reciprocal(denom, approx=True)

    pv = jnp.einsum("hqk,hkd->hqd", p.astype(bf16), v_scr[...],
                    preferred_element_type=f32)                      # (H, TQ, hd)

    # ---- output projection: fold heads back, single (TQ,D)@(D,D) matmul ----
    attn_cat = jnp.swapaxes(pv, 0, 1).reshape(TQ, D).astype(bf16)    # (TQ, D)
    attn_out = jnp.dot(attn_cat, wproj_ref[...],
                       preferred_element_type=f32) + bproj           # (TQ, D)

    # ---- residual 1 ----
    x1 = x_q + attn_out

    # ---- ffn_norm (DyT) ----
    n2 = (gamma2 * jnp.tanh(alpha2 * x1) + beta2).astype(bf16)

    # ---- FeedForward: Linear -> exact GELU -> Linear ----
    h1 = jnp.dot(n2, w1_ref[...], preferred_element_type=f32) + b1_ref[...]
    h1 = 0.5 * h1 * (1.0 + lax.erf(h1 * 0.7071067811865476))         # exact GELU, f32
    h2 = jnp.dot(h1.astype(bf16), w2_ref[...], preferred_element_type=f32) + b2

    # ---- residual 2 ----
    out_ref[0] = (x1 + h2).astype(out_ref.dtype)


def _vmem_limit_bytes():
    try:
        cap = getattr(pltpu.get_tpu_info(), "vmem_capacity_bytes",
                      128 * 1024 * 1024)
    except Exception:
        cap = 128 * 1024 * 1024
    # ~96 MiB on v5e/v6e (128 MiB physical), ~48 MiB on v7x (64 MiB physical).
    return int(min(cap * 3 // 4, 100 * 1024 * 1024))


def transformer_block(x, params, *, num_heads):
    B, S, D = x.shape
    H = num_heads
    assert D % H == 0, "dim must be divisible by num_heads"
    hd = D // H
    hidden = params["w1"].shape[1]
    bf16 = jnp.bfloat16

    vmem_limit = _vmem_limit_bytes()

    # q-tile: largest of {512, 256, 128} dividing S (capped at 256 on small-VMEM
    # chips, i.e. v7x); tiny sequences use the whole sequence as one tile.
    tq_candidates = (256, 128) if vmem_limit < 64 * 1024 * 1024 else (512, 256, 128)
    TQ = next((t for t in tq_candidates if S % t == 0), S)
    assert S % TQ == 0

    # --- host-side weight re-layout (no in-kernel lane slicing) ---
    wqkv = params["wqkv"]                       # (D, 3D), column order [3][H][hd]
    wq = wqkv[:, 0 * D:1 * D].astype(bf16)
    wk = wqkv[:, 1 * D:2 * D].astype(bf16)
    wv = wqkv[:, 2 * D:3 * D].astype(bf16)
    bqkv = params["bqkv"]
    wproj = params["wproj"].astype(bf16)        # (D, D), input dim ordered [H][hd]
    w1 = params["w1"].astype(bf16)
    b1 = params["b1"].reshape(1, hidden)
    w2 = params["w2"].astype(bf16)
    # Nine length-D vectors packed into one (9, D) operand (single DMA stream).
    vecs = jnp.stack([
        params["gamma1"], params["beta1"],
        bqkv[0 * D:1 * D], bqkv[1 * D:2 * D], bqkv[2 * D:3 * D],
        params["bproj"],
        params["gamma2"], params["beta2"],
        params["b2"],
    ]).astype(jnp.float32)                      # (9, D)
    alphas = jnp.concatenate([params["alpha1"], params["alpha2"]]).astype(jnp.float32)

    def const_spec(shape):
        nd = len(shape)
        # Block index never changes -> single-buffer to halve VMEM residency.
        return pl.BlockSpec(shape, lambda b, qi, _n=nd: (0,) * _n,
                            pipeline_mode=pl.Buffered(1))

    kernel = functools.partial(transformer_block_kernel, num_heads=H, q_tile=TQ)

    # K/V are computed once per batch (cached in scratch), so FLOPs are not
    # multiplied by the number of q-tiles.
    flops = int(2 * B * S * D * 3 * D            # q/k/v projections
                + 4 * B * H * S * S * hd         # scores + p@v
                + 2 * B * S * D * D              # output projection
                + 4 * B * S * D * hidden)        # FFN
    transcendentals = int(B * S * (3 * D + hidden) + B * H * S * S)
    bytes_accessed = int(4 * 2 * B * S * D
                         + 2 * (4 * D * D + 2 * D * hidden)
                         + 4 * (9 * D + hidden) + 8)

    return pl.pallas_call(
        kernel,
        out_shape=jax.ShapeDtypeStruct((B, S, D), x.dtype),
        grid_spec=pltpu.PrefetchScalarGridSpec(
            num_scalar_prefetch=0,
            grid=(B, S // TQ),
            in_specs=[
                pl.BlockSpec((1, S, D), lambda b, qi: (b, 0, 0)),     # x (full seq, 1 DMA/batch)
                pl.BlockSpec(memory_space=pltpu.MemorySpace.SMEM),    # alphas (2,)
                const_spec((9, D)),                                   # packed vectors
                const_spec((D, D)), const_spec((D, D)), const_spec((D, D)),  # wq, wk, wv
                const_spec((D, D)),                                   # wproj
                const_spec((D, hidden)), const_spec((1, hidden)),     # w1, b1
                const_spec((hidden, D)),                              # w2
            ],
            out_specs=pl.BlockSpec((1, TQ, D), lambda b, qi: (b, qi, 0)),
            scratch_shapes=[
                pltpu.VMEM((H, S, hd), bf16),                         # K cache (per batch)
                pltpu.VMEM((H, S, hd), bf16),                         # V cache (per batch)
            ],
        ),
        compiler_params=pltpu.CompilerParams(
            # batch is megacore-parallel; qi MUST be arbitrary because later
            # q-tiles read the K/V scratch written at qi == 0.
            dimension_semantics=("parallel", "arbitrary"),
            vmem_limit_bytes=vmem_limit,
        ),
        cost_estimate=pl.CostEstimate(
            flops=flops, transcendentals=transcendentals,
            bytes_accessed=bytes_accessed),
    )(x, alphas, vecs,
      wq, wk, wv, wproj,
      w1, b1, w2)


def make_params(key, dim, num_heads, ffn_ratio=4.0, init_alpha=0.5):
    hidden = int(dim * ffn_ratio)
    ks = jax.random.split(key, 8)
    f32 = jnp.float32
    # Natural (PyTorch-equivalent, pre-transposed so forward is x @ W) layouts;
    # the wrapper derives kernel layouts (split / pack / bf16 cast).
    return {
        "alpha1": jnp.full((1,), init_alpha, f32),
        "gamma1": jnp.ones((dim,), f32),
        "beta1": jnp.zeros((dim,), f32),
        "wqkv": 0.02 * jax.random.normal(ks[0], (dim, 3 * dim), f32),
        "bqkv": 0.02 * jax.random.normal(ks[1], (3 * dim,), f32),
        "wproj": 0.02 * jax.random.normal(ks[2], (dim, dim), f32),
        "bproj": 0.02 * jax.random.normal(ks[3], (dim,), f32),
        "alpha2": jnp.full((1,), init_alpha, f32),
        "gamma2": jnp.ones((dim,), f32),
        "beta2": jnp.zeros((dim,), f32),
        "w1": 0.02 * jax.random.normal(ks[4], (dim, hidden), f32),
        "b1": 0.02 * jax.random.normal(ks[5], (hidden,), f32),
        "w2": 0.02 * jax.random.normal(ks[6], (hidden, dim), f32),
        "b2": 0.02 * jax.random.normal(ks[7], (dim,), f32),
    }


def reference_forward(x, p, num_heads):
    # Pure-JAX f32 reference mirroring the PyTorch module (dropout=0).
    B, S, D = x.shape
    hd = D // num_heads

    def dyt(x, a, g, b):
        return g[None, None, :] * jnp.tanh(a * x) + b[None, None, :]

    nx = dyt(x, p["alpha1"][0], p["gamma1"], p["beta1"])
    qkv = nx @ p["wqkv"] + p["bqkv"]
    qkv = qkv.reshape(B, S, 3, num_heads, hd).transpose(2, 0, 3, 1, 4)
    q, k, v = qkv[0], qkv[1], qkv[2]
    attn = jnp.einsum("bhqd,bhkd->bhqk", q, k) * (hd ** -0.5)
    attn = jax.nn.softmax(attn, axis=-1)
    out = jnp.einsum("bhqk,bhkd->bhqd", attn, v).transpose(0, 2, 1, 3).reshape(B, S, D)
    out = out @ p["wproj"] + p["bproj"]
    x = x + out
    nx = dyt(x, p["alpha2"][0], p["gamma2"], p["beta2"])
    h = jax.nn.gelu(nx @ p["w1"] + p["b1"], approximate=False)
    h = h @ p["w2"] + p["b2"]
    return x + h


if __name__ == "__main__":
    B, S, D = 2, 8, 32
    num_heads = 4

    key = jax.random.PRNGKey(0)
    kx, kp = jax.random.split(key)
    x = jax.random.normal(kx, (B, S, D), jnp.float32)
    params = make_params(kp, D, num_heads)

    out = transformer_block(x, params, num_heads=num_heads)
    out = jax.block_until_ready(out)

    ref = reference_forward(x, params, num_heads)
    assert out.shape == (B, S, D)
    # bf16 matmul operands + approx reciprocal => looser tolerance than f32.
    err = float(jnp.max(jnp.abs(out - ref)))
    assert jnp.allclose(out, ref, atol=2e-2, rtol=2e-2), f"mismatch vs reference, max abs err={err}"

    print("KERNEL_OK")
</pallas_src>

<mosaic_0001>
module attributes {stable_mosaic.version = 11 : i64} {
  func.func @transformer_block_kernel(%arg0: i32, %arg1: i32, %arg2: memref<1x8x32xf32, #tpu.memory_space<vmem>>, %arg3: memref<2xf32, #tpu.memory_space<smem>>, %arg4: memref<9x32xf32, #tpu.memory_space<vmem>>, %arg5: memref<32x32xbf16, #tpu.memory_space<vmem>>, %arg6: memref<32x32xbf16, #tpu.memory_space<vmem>>, %arg7: memref<32x32xbf16, #tpu.memory_space<vmem>>, %arg8: memref<32x32xbf16, #tpu.memory_space<vmem>>, %arg9: memref<32x128xbf16, #tpu.memory_space<vmem>>, %arg10: memref<1x128xf32, #tpu.memory_space<vmem>>, %arg11: memref<128x32xbf16, #tpu.memory_space<vmem>>, %arg12: memref<1x8x32xf32, #tpu.memory_space<vmem>>, %arg13: memref<4x8x8xbf16, #tpu.memory_space<vmem>>, %arg14: memref<4x8x8xbf16, #tpu.memory_space<vmem>>) attributes {dimension_semantics = [#tpu.dimension_semantics<parallel>, #tpu.dimension_semantics<arbitrary>], iteration_bounds = array<i64: 2, 1>, scalar_prefetch = 0 : i64, scratch_operands = 2 : i64, tpu.core_type = #tpu.core_type<tc>, window_params = [{transform_indices = @transform_0, window_bounds = array<i64: 1, 8, 32>}, {transform_indices = @transform_1, window_bounds = array<i64: 2>}, {pipeline_mode = #tpu.pipeline_mode<synchronous>, transform_indices = @transform_2, window_bounds = array<i64: 9, 32>}, {pipeline_mode = #tpu.pipeline_mode<synchronous>, transform_indices = @transform_3, window_bounds = array<i64: 32, 32>}, {pipeline_mode = #tpu.pipeline_mode<synchronous>, transform_indices = @transform_4, window_bounds = array<i64: 32, 32>}, {pipeline_mode = #tpu.pipeline_mode<synchronous>, transform_indices = @transform_5, window_bounds = array<i64: 32, 32>}, {pipeline_mode = #tpu.pipeline_mode<synchronous>, transform_indices = @transform_6, window_bounds = array<i64: 32, 32>}, {pipeline_mode = #tpu.pipeline_mode<synchronous>, transform_indices = @transform_7, window_bounds = array<i64: 32, 128>}, {pipeline_mode = #tpu.pipeline_mode<synchronous>, transform_indices = @transform_8, window_bounds = array<i64: 1, 128>}, {pipeline_mode = #tpu.pipeline_mode<synchronous>, transform_indices = @transform_9, window_bounds = array<i64: 128, 32>}, {transform_indices = @transform_10, window_bounds = array<i64: 1, 8, 32>}]} {
    %c0 = arith.constant 0 : index
    %0 = memref.load %arg3[%c0] : memref<2xf32, #tpu.memory_space<smem>>
    %c1 = arith.constant 1 : index
    %1 = memref.load %arg3[%c1] : memref<2xf32, #tpu.memory_space<smem>>
    %c0_0 = arith.constant 0 : index
    %c0_1 = arith.constant 0 : index
    %2 = vector.load %arg4[%c0_0, %c0_1] : memref<9x32xf32, #tpu.memory_space<vmem>>, vector<9x32xf32>
    %3 = vector.extract_strided_slice %2 {offsets = [0, 0], sizes = [1, 32], strides = [1, 1]} : vector<9x32xf32> to vector<1x32xf32>
    %4 = vector.extract_strided_slice %2 {offsets = [1, 0], sizes = [1, 32], strides = [1, 1]} : vector<9x32xf32> to vector<1x32xf32>
    %5 = vector.extract_strided_slice %2 {offsets = [2, 0], sizes = [1, 32], strides = [1, 1]} : vector<9x32xf32> to vector<1x32xf32>
    %6 = vector.extract_strided_slice %2 {offsets = [3, 0], sizes = [1, 32], strides = [1, 1]} : vector<9x32xf32> to vector<1x32xf32>
    %7 = vector.extract_strided_slice %2 {offsets = [4, 0], sizes = [1, 32], strides = [1, 1]} : vector<9x32xf32> to vector<1x32xf32>
    %8 = vector.extract_strided_slice %2 {offsets = [5, 0], sizes = [1, 32], strides = [1, 1]} : vector<9x32xf32> to vector<1x32xf32>
    %9 = vector.extract_strided_slice %2 {offsets = [6, 0], sizes = [1, 32], strides = [1, 1]} : vector<9x32xf32> to vector<1x32xf32>
    %10 = vector.extract_strided_slice %2 {offsets = [7, 0], sizes = [1, 32], strides = [1, 1]} : vector<9x32xf32> to vector<1x32xf32>
    %11 = vector.extract_strided_slice %2 {offsets = [8, 0], sizes = [1, 32], strides = [1, 1]} : vector<9x32xf32> to vector<1x32xf32>
    %c0_i32 = arith.constant 0 : i32
    %12 = arith.cmpi eq, %arg1, %c0_i32 : i32
    %13 = arith.extui %12 : i1 to i32
    %c0_i32_2 = arith.constant 0 : i32
    %14 = arith.cmpi ne, %13, %c0_i32_2 : i32
    scf.if %14 {
      %c0_35 = arith.constant 0 : index
      %c0_36 = arith.constant 0 : index
      %c0_37 = arith.constant 0 : index
      %90 = vector.load %arg2[%c0_35, %c0_36, %c0_37] : memref<1x8x32xf32, #tpu.memory_space<vmem>>, vector<1x8x32xf32>
      %91 = vector.shape_cast %90 : vector<1x8x32xf32> to vector<8x32xf32>
      %92 = vector.broadcast %0 : f32 to vector<8x32xf32>
      %93 = arith.mulf %92, %91 : vector<8x32xf32>
      %94 = math.tanh %93 : vector<8x32xf32>
      %95 = vector.broadcast %3 : vector<1x32xf32> to vector<8x32xf32>
      %96 = arith.mulf %95, %94 : vector<8x32xf32>
      %97 = vector.broadcast %4 : vector<1x32xf32> to vector<8x32xf32>
      %98 = arith.addf %96, %97 : vector<8x32xf32>
      %99 = arith.truncf %98 : vector<8x32xf32> to vector<8x32xbf16>
      %c0_38 = arith.constant 0 : index
      %c0_39 = arith.constant 0 : index
      %100 = vector.load %arg6[%c0_38, %c0_39] : memref<32x32xbf16, #tpu.memory_space<vmem>>, vector<32x32xbf16>
      %cst_40 = arith.constant dense<0.000000e+00> : vector<8x32xf32>
      %101 = tpu.matmul %99, %100, %cst_40 {dimension_numbers = #tpu.dot_dimension_numbers<[1], [0], [0], [1], [0, 0, 1, 1], [], []>} : vector<8x32xbf16>, vector<32x32xbf16>, vector<8x32xf32> -> vector<8x32xf32>
      %102 = vector.broadcast %6 : vector<1x32xf32> to vector<8x32xf32>
      %103 = arith.addf %101, %102 : vector<8x32xf32>
      %c0_41 = arith.constant 0 : index
      %c0_42 = arith.constant 0 : index
      %104 = vector.load %arg7[%c0_41, %c0_42] : memref<32x32xbf16, #tpu.memory_space<vmem>>, vector<32x32xbf16>
      %cst_43 = arith.constant dense<0.000000e+00> : vector<8x32xf32>
      %105 = tpu.matmul %99, %104, %cst_43 {dimension_numbers = #tpu.dot_dimension_numbers<[1], [0], [0], [1], [0, 0, 1, 1], [], []>} : vector<8x32xbf16>, vector<32x32xbf16>, vector<8x32xf32> -> vector<8x32xf32>
      %106 = vector.broadcast %7 : vector<1x32xf32> to vector<8x32xf32>
      %107 = arith.addf %105, %106 : vector<8x32xf32>
      %108 = vector.shape_cast %103 : vector<8x32xf32> to vector<8x4x8xf32>
      %109 = tpu.transpose %108, [1, 0, 2] : vector<8x4x8xf32> -> vector<4x8x8xf32>
      %110 = arith.truncf %109 : vector<4x8x8xf32> to vector<4x8x8xbf16>
      %c0_44 = arith.constant 0 : index
      %c0_45 = arith.constant 0 : index
      %c0_46 = arith.constant 0 : index
      %111 = vector.load %arg13[%c0_44, %c0_45, %c0_46] : memref<4x8x8xbf16, #tpu.memory_space<vmem>>, vector<4x8x8xbf16>
      tpu.vector_store %arg13[%c0_44, %c0_45, %c0_46], %110 {strides = array<i32>} : memref<4x8x8xbf16, #tpu.memory_space<vmem>>, vector<4x8x8xbf16>,
      %112 = vector.shape_cast %107 : vector<8x32xf32> to vector<8x4x8xf32>
      %113 = tpu.transpose %112, [1, 0, 2] : vector<8x4x8xf32> -> vector<4x8x8xf32>
      %114 = arith.truncf %113 : vector<4x8x8xf32> to vector<4x8x8xbf16>
      %c0_47 = arith.constant 0 : index
      %c0_48 = arith.constant 0 : index
      %c0_49 = arith.constant 0 : index
      %115 = vector.load %arg14[%c0_47, %c0_48, %c0_49] : memref<4x8x8xbf16, #tpu.memory_space<vmem>>, vector<4x8x8xbf16>
      tpu.vector_store %arg14[%c0_47, %c0_48, %c0_49], %114 {strides = array<i32>} : memref<4x8x8xbf16, #tpu.memory_space<vmem>>, vector<4x8x8xbf16>,
    } else {
    }
    %c8_i32 = arith.constant 8 : i32
    %15 = arith.muli %arg1, %c8_i32 : i32
    %16 = tpu.assume_multiple %15, 8 : i32
    %c0_3 = arith.constant 0 : index
    %17 = arith.index_cast %16 : i32 to index
    %c0_4 = arith.constant 0 : index
    %18 = vector.load %arg2[%c0_3, %17, %c0_4] : memref<1x8x32xf32, #tpu.memory_space<vmem>>, vector<1x8x32xf32>
    %19 = vector.shape_cast %18 : vector<1x8x32xf32> to vector<8x32xf32>
    %20 = vector.broadcast %0 : f32 to vector<8x32xf32>
    %21 = arith.mulf %20, %19 : vector<8x32xf32>
    %22 = math.tanh %21 : vector<8x32xf32>
    %23 = vector.broadcast %3 : vector<1x32xf32> to vector<8x32xf32>
    %24 = arith.mulf %23, %22 : vector<8x32xf32>
    %25 = vector.broadcast %4 : vector<1x32xf32> to vector<8x32xf32>
    %26 = arith.addf %24, %25 : vector<8x32xf32>
    %27 = arith.truncf %26 : vector<8x32xf32> to vector<8x32xbf16>
    %c0_5 = arith.constant 0 : index
    %c0_6 = arith.constant 0 : index
    %28 = vector.load %arg5[%c0_5, %c0_6] : memref<32x32xbf16, #tpu.memory_space<vmem>>, vector<32x32xbf16>
    %cst = arith.constant dense<0.000000e+00> : vector<8x32xf32>
    %29 = tpu.matmul %27, %28, %cst {dimension_numbers = #tpu.dot_dimension_numbers<[1], [0], [0], [1], [0, 0, 1, 1], [], []>} : vector<8x32xbf16>, vector<32x32xbf16>, vector<8x32xf32> -> vector<8x32xf32>
    %30 = vector.broadcast %5 : vector<1x32xf32> to vector<8x32xf32>
    %31 = arith.addf %29, %30 : vector<8x32xf32>
    %32 = vector.shape_cast %31 : vector<8x32xf32> to vector<8x4x8xf32>
    %33 = tpu.transpose %32, [1, 0, 2] : vector<8x4x8xf32> -> vector<4x8x8xf32>
    %cst_7 = arith.constant 0.353553385 : f32
    %34 = vector.broadcast %cst_7 : f32 to vector<4x8x8xf32>
    %35 = arith.mulf %33, %34 : vector<4x8x8xf32>
    %36 = arith.truncf %35 : vector<4x8x8xf32> to vector<4x8x8xbf16>
    %c0_8 = arith.constant 0 : index
    %c0_9 = arith.constant 0 : index
    %c0_10 = arith.constant 0 : index
    %37 = vector.load %arg13[%c0_8, %c0_9, %c0_10] : memref<4x8x8xbf16, #tpu.memory_space<vmem>>, vector<4x8x8xbf16>
    "tpu.trace_start"() <{level = 10 : i32, message = "hqd,hkd->hqk"}> : () -> ()
    %cst_11 = arith.constant dense<0.000000e+00> : vector<4x8x8xf32>
    %38 = tpu.matmul %36, %37, %cst_11 {dimension_numbers = #tpu.dot_dimension_numbers<[2], [2], [1], [1], [0, 0, 0, 1, 1, 1], [0], [0]>} : vector<4x8x8xbf16>, vector<4x8x8xbf16>, vector<4x8x8xf32> -> vector<4x8x8xf32>
    "tpu.trace_stop"() : () -> ()
    %cst_12 = arith.constant dense<0xFF800000> : vector<4x8xf32>
    %39 = vector.multi_reduction <maximumf>, %38, %cst_12 [2] : vector<4x8x8xf32> to vector<4x8xf32>
    %40 = vector.shape_cast %39 : vector<4x8xf32> to vector<4x8x1xf32>
    %41 = vector.broadcast %40 : vector<4x8x1xf32> to vector<4x8x8xf32>
    %42 = arith.subf %38, %41 : vector<4x8x8xf32>
    %43 = math.exp %42 : vector<4x8x8xf32>
    %cst_13 = arith.constant dense<0.000000e+00> : vector<4x8xf32>
    %44 = vector.multi_reduction <add>, %43, %cst_13 [2] : vector<4x8x8xf32> to vector<4x8xf32>
    %45 = vector.shape_cast %44 : vector<4x8xf32> to vector<4x8x1xf32>
    %46 = tpu.reciprocal %45 {approx = true} : vector<4x8x1xf32> -> vector<4x8x1xf32>
    %47 = vector.broadcast %46 : vector<4x8x1xf32> to vector<4x8x8xf32>
    %48 = arith.mulf %43, %47 : vector<4x8x8xf32>
    %49 = arith.truncf %48 : vector<4x8x8xf32> to vector<4x8x8xbf16>
    %c0_14 = arith.constant 0 : index
    %c0_15 = arith.constant 0 : index
    %c0_16 = arith.constant 0 : index
    %50 = vector.load %arg14[%c0_14, %c0_15, %c0_16] : memref<4x8x8xbf16, #tpu.memory_space<vmem>>, vector<4x8x8xbf16>
    "tpu.trace_start"() <{level = 10 : i32, message = "hqk,hkd->hqd"}> : () -> ()
    %cst_17 = arith.constant dense<0.000000e+00> : vector<4x8x8xf32>
    %51 = tpu.matmul %49, %50, %cst_17 {dimension_numbers = #tpu.dot_dimension_numbers<[2], [1], [1], [2], [0, 0, 0, 1, 1, 2], [0], [0]>} : vector<4x8x8xbf16>, vector<4x8x8xbf16>, vector<4x8x8xf32> -> vector<4x8x8xf32>
    "tpu.trace_stop"() : () -> ()
    %52 = tpu.transpose %51, [1, 0, 2] : vector<4x8x8xf32> -> vector<8x4x8xf32>
    %53 = vector.shape_cast %52 : vector<8x4x8xf32> to vector<8x32xf32>
    %54 = arith.truncf %53 : vector<8x32xf32> to vector<8x32xbf16>
    %c0_18 = arith.constant 0 : index
    %c0_19 = arith.constant 0 : index
    %55 = vector.load %arg8[%c0_18, %c0_19] : memref<32x32xbf16, #tpu.memory_space<vmem>>, vector<32x32xbf16>
    %cst_20 = arith.constant dense<0.000000e+00> : vector<8x32xf32>
    %56 = tpu.matmul %54, %55, %cst_20 {dimension_numbers = #tpu.dot_dimension_numbers<[1], [0], [0], [1], [0, 0, 1, 1], [], []>} : vector<8x32xbf16>, vector<32x32xbf16>, vector<8x32xf32> -> vector<8x32xf32>
    %57 = vector.broadcast %8 : vector<1x32xf32> to vector<8x32xf32>
    %58 = arith.addf %56, %57 : vector<8x32xf32>
    %59 = arith.addf %19, %58 : vector<8x32xf32>
    %60 = vector.broadcast %1 : f32 to vector<8x32xf32>
    %61 = arith.mulf %60, %59 : vector<8x32xf32>
    %62 = math.tanh %61 : vector<8x32xf32>
    %63 = vector.broadcast %9 : vector<1x32xf32> to vector<8x32xf32>
    %64 = arith.mulf %63, %62 : vector<8x32xf32>
    %65 = vector.broadcast %10 : vector<1x32xf32> to vector<8x32xf32>
    %66 = arith.addf %64, %65 : vector<8x32xf32>
    %67 = arith.truncf %66 : vector<8x32xf32> to vector<8x32xbf16>
    %c0_21 = arith.constant 0 : index
    %c0_22 = arith.constant 0 : index
    %68 = vector.load %arg9[%c0_21, %c0_22] : memref<32x128xbf16, #tpu.memory_space<vmem>>, vector<32x128xbf16>
    %cst_23 = arith.constant dense<0.000000e+00> : vector<8x128xf32>
    %69 = tpu.matmul %67, %68, %cst_23 {dimension_numbers = #tpu.dot_dimension_numbers<[1], [0], [0], [1], [0, 0, 1, 1], [], []>} : vector<8x32xbf16>, vector<32x128xbf16>, vector<8x128xf32> -> vector<8x128xf32>
    %c0_24 = arith.constant 0 : index
    %c0_25 = arith.constant 0 : index
    %70 = vector.load %arg10[%c0_24, %c0_25] : memref<1x128xf32, #tpu.memory_space<vmem>>, vector<1x128xf32>
    %71 = vector.broadcast %70 : vector<1x128xf32> to vector<8x128xf32>
    %72 = arith.addf %69, %71 : vector<8x128xf32>
    %cst_26 = arith.constant 5.000000e-01 : f32
    %73 = vector.broadcast %cst_26 : f32 to vector<8x128xf32>
    %74 = arith.mulf %73, %72 : vector<8x128xf32>
    %cst_27 = arith.constant 0.707106769 : f32
    %75 = vector.broadcast %cst_27 : f32 to vector<8x128xf32>
    %76 = arith.mulf %72, %75 : vector<8x128xf32>
    %77 = math.erf %76 : vector<8x128xf32>
    %cst_28 = arith.constant 1.000000e+00 : f32
    %78 = vector.broadcast %cst_28 : f32 to vector<8x128xf32>
    %79 = arith.addf %78, %77 : vector<8x128xf32>
    %80 = arith.mulf %74, %79 : vector<8x128xf32>
    %81 = arith.truncf %80 : vector<8x128xf32> to vector<8x128xbf16>
    %c0_29 = arith.constant 0 : index
    %c0_30 = arith.constant 0 : index
    %82 = vector.load %arg11[%c0_29, %c0_30] : memref<128x32xbf16, #tpu.memory_space<vmem>>, vector<128x32xbf16>
    %cst_31 = arith.constant dense<0.000000e+00> : vector<8x32xf32>
    %83 = tpu.matmul %81, %82, %cst_31 {dimension_numbers = #tpu.dot_dimension_numbers<[1], [0], [0], [1], [0, 0, 1, 1], [], []>} : vector<8x128xbf16>, vector<128x32xbf16>, vector<8x32xf32> -> vector<8x32xf32>
    %84 = vector.broadcast %11 : vector<1x32xf32> to vector<8x32xf32>
    %85 = arith.addf %83, %84 : vector<8x32xf32>
    %86 = arith.addf %59, %85 : vector<8x32xf32>
    %c0_32 = arith.constant 0 : index
    %c0_33 = arith.constant 0 : index
    %c0_34 = arith.constant 0 : index
    %87 = vector.load %arg12[%c0_32, %c0_33, %c0_34] : memref<1x8x32xf32, #tpu.memory_space<vmem>>, vector<1x8x32xf32>
    %88 = vector.shape_cast %87 : vector<1x8x32xf32> to vector<8x32xf32>
    %89 = vector.shape_cast %86 : vector<8x32xf32> to vector<1x8x32xf32>
    tpu.vector_store %arg12[%c0_32, %c0_33, %c0_34], %89 {strides = array<i32>} : memref<1x8x32xf32, #tpu.memory_space<vmem>>, vector<1x8x32xf32>,
    return
  }
  func.func @transform_0(%arg0: i32, %arg1: i32) -> (i32, i32, i32) {
    %c0_i32 = arith.constant 0 : i32
    %c0_i32_0 = arith.constant 0 : i32
    %c0_i32_1 = arith.constant 0 : i32
    return %arg0, %c0_i32, %c0_i32_0 : i32, i32, i32
  }
  func.func @transform_1(%arg0: i32, %arg1: i32) -> i32 {
    %c0_i32 = arith.constant 0 : i32
    %c0_i32_0 = arith.constant 0 : i32
    return %c0_i32 : i32
  }
  func.func @transform_2(%arg0: i32, %arg1: i32) -> (i32, i32) {
    %c0_i32 = arith.constant 0 : i32
    %c0_i32_0 = arith.constant 0 : i32
    %c0_i32_1 = arith.constant 0 : i32
    return %c0_i32, %c0_i32_0 : i32, i32
  }
  func.func @transform_3(%arg0: i32, %arg1: i32) -> (i32, i32) {
    %c0_i32 = arith.constant 0 : i32
    %c0_i32_0 = arith.constant 0 : i32
    %c0_i32_1 = arith.constant 0 : i32
    return %c0_i32, %c0_i32_0 : i32, i32
  }
  func.func @transform_4(%arg0: i32, %arg1: i32) -> (i32, i32) {
    %c0_i32 = arith.constant 0 : i32
    %c0_i32_0 = arith.constant 0 : i32
    %c0_i32_1 = arith.constant 0 : i32
    return %c0_i32, %c0_i32_0 : i32, i32
  }
  func.func @transform_5(%arg0: i32, %arg1: i32) -> (i32, i32) {
    %c0_i32 = arith.constant 0 : i32
    %c0_i32_0 = arith.constant 0 : i32
    %c0_i32_1 = arith.constant 0 : i32
    return %c0_i32, %c0_i32_0 : i32, i32
  }
  func.func @transform_6(%arg0: i32, %arg1: i32) -> (i32, i32) {
    %c0_i32 = arith.constant 0 : i32
    %c0_i32_0 = arith.constant 0 : i32
    %c0_i32_1 = arith.constant 0 : i32
    return %c0_i32, %c0_i32_0 : i32, i32
  }
  func.func @transform_7(%arg0: i32, %arg1: i32) -> (i32, i32) {
    %c0_i32 = arith.constant 0 : i32
    %c0_i32_0 = arith.constant 0 : i32
    %c0_i32_1 = arith.constant 0 : i32
    return %c0_i32, %c0_i32_0 : i32, i32
  }
  func.func @transform_8(%arg0: i32, %arg1: i32) -> (i32, i32) {
    %c0_i32 = arith.constant 0 : i32
    %c0_i32_0 = arith.constant 0 : i32
    %c0_i32_1 = arith.constant 0 : i32
    return %c0_i32, %c0_i32_0 : i32, i32
  }
  func.func @transform_9(%arg0: i32, %arg1: i32) -> (i32, i32) {
    %c0_i32 = arith.constant 0 : i32
    %c0_i32_0 = arith.constant 0 : i32
    %c0_i32_1 = arith.constant 0 : i32
    return %c0_i32, %c0_i32_0 : i32, i32
  }
  func.func @transform_10(%arg0: i32, %arg1: i32) -> (i32, i32, i32) {
    %c0_i32 = arith.constant 0 : i32
    %c0_i32_0 = arith.constant 0 : i32
    return %arg0, %arg1, %c0_i32 : i32, i32, i32
  }
}

</mosaic_0001>

<llo_original>
// kernel: tpu_custom_call.1
$region0: #{tpu_custom_call.1}
  #allocation0 [shape = 'u32[]', space=smem, size = 0x4, offset = 0x4, fixed_abs, tag = 'smem constant byte address 0x4 - core index']
  #allocation1 [shape = 'u32[144,128]{1,0:T(1,128)}', space=vmem, size = 0x12000, scoped, tag = 'internal scratch']
  #allocation2 [shape = 'bf16[4,8,8]{2,1,0:T(8,128)(2,1)}', space=vmem, size = 0x2000, scoped, tag = 'scratch operand']
  #allocation3 [shape = 'bf16[4,8,8]{2,1,0:T(8,128)(2,1)}', space=vmem, size = 0x2000, scoped, tag = 'scratch operand']
  %s0 = inlined_call_operand.vmem [shape: f32[2,8,32], index: 0, kind: input, shape index: {}]
  %s1 = inlined_call_operand.hbm [shape: f32[2], index: 1, kind: input, shape index: {}]
  %s2 = inlined_call_operand.vmem [shape: f32[9,32], index: 2, kind: input, shape index: {}]
  %s3 = inlined_call_operand.vmem [shape: bf16[32,32], index: 3, kind: input, shape index: {}]
  %s4 = inlined_call_operand.vmem [shape: bf16[32,32], index: 4, kind: input, shape index: {}]
  %s5 = inlined_call_operand.vmem [shape: bf16[32,32], index: 5, kind: input, shape index: {}]
  %s6 = inlined_call_operand.hbm [shape: bf16[32,32], index: 6, kind: input, shape index: {}]
  %s7 = inlined_call_operand.hbm [shape: bf16[32,128], index: 7, kind: input, shape index: {}]
  %s8 = inlined_call_operand.hbm [shape: f32[1,128], index: 8, kind: input, shape index: {}]
  %s9 = inlined_call_operand.vmem [shape: bf16[128,32], index: 9, kind: input, shape index: {}]
  %s10 = inlined_call_operand.hbm [shape: f32[2,8,32], index: 10, kind: output, shape index: {}]
  %s11 = sld [smem:[#allocation0]]
  $region93: #{tpu_custom_call.1} parent=0
    _
  %s13 = ssub.s32 1, %s11
  %s14 = scalar_select 0, %s13, %s11
  $region1: #{tpu_custom_call.1} parent=0
    #allocation4 [shape = 'u8[512]{0}', space=smem, size = 0x200, scoped, tag = 'input window, operand 1, single buffered']
    #allocation5 [shape = 's32[2]{0}', space=sflag, size = 0x8, scoped, tag = 'scoped memory for tpu_custom_call.1']
    #allocation6 [shape = 's32[2]{0}', space=sflag, size = 0x8, scoped, tag = 'scoped memory for tpu_custom_call.1']
    #allocation7 [shape = 's32[2]{0}', space=sflag, size = 0x8, scoped, tag = 'scoped memory for tpu_custom_call.1']
    #allocation8 [shape = 'u8[8192]{0}', space=vmem, size = 0x2000, scoped, tag = 'input window, operand 6, single buffered']
    #allocation9 [shape = 'u8[8192]{0}', space=vmem, size = 0x2000, scoped, tag = 'input window, operand 7, single buffered']
    #allocation10 [shape = 's32[1]{0}', space=sflag, size = 0x4, scoped, tag = 'scoped memory for tpu_custom_call.1']
    #allocation11 [shape = 'u8[512]{0}', space=vmem, size = 0x400, scoped, tag = 'input window, operand 8, single buffered']
    #allocation12 [shape = 'u8[8192]{0}', space=vmem, size = 0x2000, scoped, tag = 'output window, operand 0']
    %15 = vsyncpa [#allocation7], 0
    %16 = vsyncpa [#allocation5], 0
    %17 = vsyncpa [#allocation10], 0
    %18 = vsyncpa [#allocation6], 0
    %s19 = scalar_lea.sflag [#allocation6], 1
    %20 = vsyncpa %s19, 0
    loop: start=0, step=1, limit=4
    $region2: #{tpu_custom_call.1} parent=1 // loop_pre_header
      _
    $region3: #{tpu_custom_call.1} parent=1 // loop_header
      %s22 = sphi 0, %s26
      %p23 = scmp.ge.s32.totalorder %s22, 4
      %s29 = sphi 0, %s41
      %s30 = sphi 0, %s37
      %s31 = sphi 0, %s29
      %s32 = sphi 0, %s30
      %s33 = sphi 0, %s31
      %s34 = sphi 0, %s32
      %s44 = sphi 0, %s46
      %s47 = sphi 0, %s44
      %s48 = sphi 0, %s47
      %s64 = sphi 0, %s48
      %s68 = sphi 0, %s68
      %s70 = sphi 0, %s68
      %s71 = sphi 0, %s70
      %s85 = sphi 0, %s71
      %s89 = sphi 0, %s89
      %s91 = sphi 0, %s89
      %s92 = sphi 0, %s91
      %s106 = sphi 0, %s92
      %s110 = sphi 0, %s110
      %s112 = sphi 0, %s110
      %s113 = sphi 0, %s112
      %s127 = sphi 0, %s113
      %s131 = sphi 0, %s131
      %s133 = sphi 0, %s131
      %s134 = sphi 0, %s133
      %s148 = sphi 0, %s134
      %s152 = sphi 0, %s152
      %s154 = sphi 0, %s152
      %s155 = sphi 0, %s154
      %s169 = sphi 0, %s155
      %s173 = sphi 0, %s173
      %s175 = sphi 0, %s173
      %s176 = sphi 0, %s175
      %s190 = sphi 0, %s176
      %s194 = sphi 0, %s194
      %s196 = sphi 0, %s194
      %s197 = sphi 0, %s196
      %s211 = sphi 0, %s197
      %s215 = sphi 0, %s215
      %s217 = sphi 0, %s215
      %s218 = sphi 0, %s217
      %s232 = sphi 0, %s218
      %s236 = sphi 0, %s236
      %s238 = sphi 0, %s236
      %s239 = sphi 0, %s238
      %s253 = sphi 0, %s239
      %s261 = sphi 0, %s263
      %s264 = sphi 0, %s261
      %s265 = sphi 0, %s264
      %s281 = sphi 0, %s265
    $region4: #{tpu_custom_call.1} parent=1 // loop_header_branch
      %25 = sbr.rel (%p23) target = $region8
    $region5: #{tpu_custom_call.1} parent=1 // loop_body
      %s27 = ssub.s32 %s22, 1
      %s28 = ssub.s32 %s22, 2
      %s35 = sadd.s32 1, %s30
      %p36 = scmp.ge.s32.totalorder %s35, 1
      %s37 = scalar_select %p36, 0, %s35
      %s38 = sadd.s32 1, %s29
      %s39 = scalar_select %p36, %s38, %s29
      %p40 = scmp.ge.s32.totalorder %s39, 2
      %s41 = scalar_select %p40, 0, %s39
      %s42 = ssub.s32 %s29, %s41
      %p43 = scmp.eq.s32.totalorder %s42, 0
      %s45 = sadd.s32 %s44, 1
      %s46 = scalar_select %p43, %s44, %s45
      %p49 = pneg %p43
      %p50 = scmp.eq.s32.totalorder %s22, 1
      %p51 = por %p49, %p50
      %p52 = scmp.ne.s32.totalorder %s44, %s47
      %p53 = scmp.eq.s32.totalorder %s22, 0
      %p54 = por %p52, %p53
      %p55 = scmp.ne.s32.totalorder %s44, %s47
      %p56 = scmp.eq.s32.totalorder %s27, 1
      %p57 = por %p55, %p56
      %p58 = scmp.ne.s32.totalorder %s47, %s48
      %p59 = scmp.eq.s32.totalorder %s27, 0
      %p60 = por %p58, %p59
      %p61 = scmp.ne.s32.totalorder %s47, %s48
      %p62 = scmp.eq.s32.totalorder %s28, 1
      %p63 = por %p61, %p62
      %p65 = scmp.ne.s32.totalorder %s48, %s64
      %p66 = scmp.eq.s32.totalorder %s28, 0
      %p67 = por %p65, %p66
      %s69 = sadd.s32 %s68, 1
      %p72 = scmp.eq.s32.totalorder %s22, 1
      %p73 = scmp.ne.s32.totalorder %s68, %s70
      %p74 = scmp.eq.s32.totalorder %s22, 0
      %p75 = por %p73, %p74
      %p76 = scmp.ne.s32.totalorder %s68, %s70
      %p77 = scmp.eq.s32.totalorder %s27, 1
      %p78 = por %p76, %p77
      %p79 = scmp.ne.s32.totalorder %s70, %s71
      %p80 = scmp.eq.s32.totalorder %s27, 0
      %p81 = por %p79, %p80
      %p82 = scmp.ne.s32.totalorder %s70, %s71
      %p83 = scmp.eq.s32.totalorder %s28, 1
      %p84 = por %p82, %p83
      %p86 = scmp.ne.s32.totalorder %s71, %s85
      %p87 = scmp.eq.s32.totalorder %s28, 0
      %p88 = por %p86, %p87
      %s90 = sadd.s32 %s89, 1
      %p93 = scmp.eq.s32.totalorder %s22, 1
      %p94 = scmp.ne.s32.totalorder %s89, %s91
      %p95 = scmp.eq.s32.totalorder %s22, 0
      %p96 = por %p94, %p95
      %p97 = scmp.ne.s32.totalorder %s89, %s91
      %p98 = scmp.eq.s32.totalorder %s27, 1
      %p99 = por %p97, %p98
      %p100 = scmp.ne.s32.totalorder %s91, %s92
      %p101 = scmp.eq.s32.totalorder %s27, 0
      %p102 = por %p100, %p101
      %p103 = scmp.ne.s32.totalorder %s91, %s92
      %p104 = scmp.eq.s32.totalorder %s28, 1
      %p105 = por %p103, %p104
      %p107 = scmp.ne.s32.totalorder %s92, %s106
      %p108 = scmp.eq.s32.totalorder %s28, 0
      %p109 = por %p107, %p108
      %s111 = sadd.s32 %s110, 1
      %p114 = scmp.eq.s32.totalorder %s22, 1
      %p115 = scmp.ne.s32.totalorder %s110, %s112
      %p116 = scmp.eq.s32.totalorder %s22, 0
      %p117 = por %p115, %p116
      %p118 = scmp.ne.s32.totalorder %s110, %s112
      %p119 = scmp.eq.s32.totalorder %s27, 1
      %p120 = por %p118, %p119
      %p121 = scmp.ne.s32.totalorder %s112, %s113
      %p122 = scmp.eq.s32.totalorder %s27, 0
      %p123 = por %p121, %p122
      %p124 = scmp.ne.s32.totalorder %s112, %s113
      %p125 = scmp.eq.s32.totalorder %s28, 1
      %p126 = por %p124, %p125
      %p128 = scmp.ne.s32.totalorder %s113, %s127
      %p129 = scmp.eq.s32.totalorder %s28, 0
      %p130 = por %p128, %p129
      %s132 = sadd.s32 %s131, 1
      %p135 = scmp.eq.s32.totalorder %s22, 1
      %p136 = scmp.ne.s32.totalorder %s131, %s133
      %p137 = scmp.eq.s32.totalorder %s22, 0
      %p138 = por %p136, %p137
      %p139 = scmp.ne.s32.totalorder %s131, %s133
      %p140 = scmp.eq.s32.totalorder %s27, 1
      %p141 = por %p139, %p140
      %p142 = scmp.ne.s32.totalorder %s133, %s134
      %p143 = scmp.eq.s32.totalorder %s27, 0
      %p144 = por %p142, %p143
      %p145 = scmp.ne.s32.totalorder %s133, %s134
      %p146 = scmp.eq.s32.totalorder %s28, 1
      %p147 = por %p145, %p146
      %p149 = scmp.ne.s32.totalorder %s134, %s148
      %p150 = scmp.eq.s32.totalorder %s28, 0
      %p151 = por %p149, %p150
      %s153 = sadd.s32 %s152, 1
      %p156 = scmp.eq.s32.totalorder %s22, 1
      %p157 = scmp.ne.s32.totalorder %s152, %s154
      %p158 = scmp.eq.s32.totalorder %s22, 0
      %p159 = por %p157, %p158
      %p160 = scmp.ne.s32.totalorder %s152, %s154
      %p161 = scmp.eq.s32.totalorder %s27, 1
      %p162 = por %p160, %p161
      %p163 = scmp.ne.s32.totalorder %s154, %s155
      %p164 = scmp.eq.s32.totalorder %s27, 0
      %p165 = por %p163, %p164
      %p166 = scmp.ne.s32.totalorder %s154, %s155
      %p167 = scmp.eq.s32.totalorder %s28, 1
      %p168 = por %p166, %p167
      %p170 = scmp.ne.s32.totalorder %s155, %s169
      %p171 = scmp.eq.s32.totalorder %s28, 0
      %p172 = por %p170, %p171
      %s174 = sadd.s32 %s173, 1
      %p177 = scmp.eq.s32.totalorder %s22, 1
      %p178 = scmp.ne.s32.totalorder %s173, %s175
      %p179 = scmp.eq.s32.totalorder %s22, 0
      %p180 = por %p178, %p179
      %p181 = scmp.ne.s32.totalorder %s173, %s175
      %p182 = scmp.eq.s32.totalorder %s27, 1
      %p183 = por %p181, %p182
      %p184 = scmp.ne.s32.totalorder %s175, %s176
      %p185 = scmp.eq.s32.totalorder %s27, 0
      %p186 = por %p184, %p185
      %p187 = scmp.ne.s32.totalorder %s175, %s176
      %p188 = scmp.eq.s32.totalorder %s28, 1
      %p189 = por %p187, %p188
      %p191 = scmp.ne.s32.totalorder %s176, %s190
      %p192 = scmp.eq.s32.totalorder %s28, 0
      %p193 = por %p191, %p192
      %s195 = sadd.s32 %s194, 1
      %p198 = scmp.eq.s32.totalorder %s22, 1
      %p199 = scmp.ne.s32.totalorder %s194, %s196
      %p200 = scmp.eq.s32.totalorder %s22, 0
      %p201 = por %p199, %p200
      %p202 = scmp.ne.s32.totalorder %s194, %s196
      %p203 = scmp.eq.s32.totalorder %s27, 1
      %p204 = por %p202, %p203
      %p205 = scmp.ne.s32.totalorder %s196, %s197
      %p206 = scmp.eq.s32.totalorder %s27, 0
      %p207 = por %p205, %p206
      %p208 = scmp.ne.s32.totalorder %s196, %s197
      %p209 = scmp.eq.s32.totalorder %s28, 1
      %p210 = por %p208, %p209
      %p212 = scmp.ne.s32.totalorder %s197, %s211
      %p213 = scmp.eq.s32.totalorder %s28, 0
      %p214 = por %p212, %p213
      %s216 = sadd.s32 %s215, 1
      %p219 = scmp.eq.s32.totalorder %s22, 1
      %p220 = scmp.ne.s32.totalorder %s215, %s217
      %p221 = scmp.eq.s32.totalorder %s22, 0
      %p222 = por %p220, %p221
      %p223 = scmp.ne.s32.totalorder %s215, %s217
      %p224 = scmp.eq.s32.totalorder %s27, 1
      %p225 = por %p223, %p224
      %p226 = scmp.ne.s32.totalorder %s217, %s218
      %p227 = scmp.eq.s32.totalorder %s27, 0
      %p228 = por %p226, %p227
      %p229 = scmp.ne.s32.totalorder %s217, %s218
      %p230 = scmp.eq.s32.totalorder %s28, 1
      %p231 = por %p229, %p230
      %p233 = scmp.ne.s32.totalorder %s218, %s232
      %p234 = scmp.eq.s32.totalorder %s28, 0
      %p235 = por %p233, %p234
      %s237 = sadd.s32 %s236, 1
      %p240 = scmp.eq.s32.totalorder %s22, 1
      %p241 = scmp.ne.s32.totalorder %s236, %s238
      %p242 = scmp.eq.s32.totalorder %s22, 0
      %p243 = por %p241, %p242
      %p244 = scmp.ne.s32.totalorder %s236, %s238
      %p245 = scmp.eq.s32.totalorder %s27, 1
      %p246 = por %p244, %p245
      %p247 = scmp.ne.s32.totalorder %s238, %s239
      %p248 = scmp.eq.s32.totalorder %s27, 0
      %p249 = por %p247, %p248
      %p250 = scmp.ne.s32.totalorder %s238, %s239
      %p251 = scmp.eq.s32.totalorder %s28, 1
      %p252 = por %p250, %p251
      %p254 = scmp.ne.s32.totalorder %s239, %s253
      %p255 = scmp.eq.s32.totalorder %s28, 0
      %p256 = por %p254, %p255
      %s257 = ssub.s32 %s29, %s41
      %s258 = ssub.s32 %s30, %s37
      %s259 = sor.u32 %s257, %s258
      %p260 = scmp.eq.s32.totalorder %s259, 0
      %s262 = sadd.s32 %s261, 1
      %s263 = scalar_select %p260, %s261, %s262
      %p266 = pneg %p260
      %p267 = scmp.eq.s32.totalorder %s22, 1
      %p268 = por %p266, %p267
      %p269 = scmp.ne.s32.totalorder %s261, %s264
      %p270 = scmp.eq.s32.totalorder %s22, 0
      %p271 = por %p269, %p270
      %p272 = scmp.ne.s32.totalorder %s261, %s264
      %p273 = scmp.eq.s32.totalorder %s27, 1
      %p274 = por %p272, %p273
      %p275 = scmp.ne.s32.totalorder %s264, %s265
      %p276 = scmp.eq.s32.totalorder %s27, 0
      %p277 = por %p275, %p276
      %p278 = scmp.ne.s32.totalorder %s264, %s265
      %p279 = scmp.eq.s32.totalorder %s28, 1
      %p280 = por %p278, %p279
      %p282 = scmp.ne.s32.totalorder %s265, %s281
      %p283 = scmp.eq.s32.totalorder %s28, 0
      %p284 = por %p282, %p283
      %p285 = scmp.le.s32.totalorder 1, %s22
      %p286 = scmp.lt.s32.totalorder %s22, 3
      %p287 = pnand %p285, %p286
      %p288 = pneg %p287
      // Predicated region
      $region9: #{tpu_custom_call.1} parent=5 // pred_check
        _
      $region10: #{tpu_custom_call.1} parent=5 // pred_check_branch
        %290 = sbr.rel (%p287) target = $region12
      $region11: #{tpu_custom_call.1} parent=5 // pred_region
        %s291 = ssub.s32 %s22, 1
        // Predicated region
        $region13: #{tpu_custom_call.1} parent=11 // pred_check
          %p292 = pneg %p81
        $region14: #{tpu_custom_call.1} parent=11 // pred_check_branch
          %294 = sbr.rel (%p292) target = $region16
        $region15: #{tpu_custom_call.1} parent=11 // pred_region
          %s296 = ssub.s32 16, 16
          %297 = vsyncadd [#allocation7], %s296
          %300 = dma.hbm_to_smem %s1, 16, [#allocation4], [#allocation7]
        $region16: #{tpu_custom_call.1} parent=11 // pred_fallthru
          _
        // Predicated region
        $region17: #{tpu_custom_call.1} parent=11 // pred_check
          %p301 = pneg %p102
        $region18: #{tpu_custom_call.1} parent=11 // pred_check_branch
          %303 = sbr.rel (%p301) target = $region20
        $region19: #{tpu_custom_call.1} parent=11 // pred_region
          _
        $region20: #{tpu_custom_call.1} parent=11 // pred_fallthru
          _
        // Predicated region
        $region21: #{tpu_custom_call.1} parent=11 // pred_check
          %p304 = pneg %p123
        $region22: #{tpu_custom_call.1} parent=11 // pred_check_branch
          %306 = sbr.rel (%p304) target = $region24
        $region23: #{tpu_custom_call.1} parent=11 // pred_region
          _
        $region24: #{tpu_custom_call.1} parent=11 // pred_fallthru
          _
        // Predicated region
        $region25: #{tpu_custom_call.1} parent=11 // pred_check
          %p307 = pneg %p144
        $region26: #{tpu_custom_call.1} parent=11 // pred_check_branch
          %309 = sbr.rel (%p307) target = $region28
        $region27: #{tpu_custom_call.1} parent=11 // pred_region
          _
        $region28: #{tpu_custom_call.1} parent=11 // pred_fallthru
          _
        // Predicated region
        $region29: #{tpu_custom_call.1} parent=11 // pred_check
          %p310 = pneg %p165
        $region30: #{tpu_custom_call.1} parent=11 // pred_check_branch
          %312 = sbr.rel (%p310) target = $region32
        $region31: #{tpu_custom_call.1} parent=11 // pred_region
          _
        $region32: #{tpu_custom_call.1} parent=11 // pred_fallthru
          _
        // Predicated region
        $region33: #{tpu_custom_call.1} parent=11 // pred_check
          %p313 = pneg %p186
        $region34: #{tpu_custom_call.1} parent=11 // pred_check_branch
          %315 = sbr.rel (%p313) target = $region36
        $region35: #{tpu_custom_call.1} parent=11 // pred_region
          %s317 = ssub.s32 256, 256
          %318 = vsyncadd [#allocation5], %s317
          %s319 = sshll.u32 [#allocation8], 4
          %s320 = int_to_ptr.vmem [resolvable:$true] %s319
          %325 = dma.hbm_to_vmem [thread:$0]  %s6, 256, %s320, [#allocation5], 64, 64, 4
        $region36: #{tpu_custom_call.1} parent=11 // pred_fallthru
          _
        // Predicated region
        $region37: #{tpu_custom_call.1} parent=11 // pred_check
          %p326 = pneg %p207
        $region38: #{tpu_custom_call.1} parent=11 // pred_check_branch
          %328 = sbr.rel (%p326) target = $region40
        $region39: #{tpu_custom_call.1} parent=11 // pred_region
          %s330 = ssub.s32 256, 256
          %331 = vsyncadd [#allocation10], %s330
          %s332 = sshll.u32 [#allocation9], 4
          %s333 = int_to_ptr.vmem [resolvable:$true] %s332
          %338 = dma.hbm_to_vmem [thread:$0]  %s7, 256, %s333, [#allocation10], 64, 64, 4
        $region40: #{tpu_custom_call.1} parent=11 // pred_fallthru
          _
        // Predicated region
        $region41: #{tpu_custom_call.1} parent=11 // pred_check
          %p339 = pneg %p228
        $region42: #{tpu_custom_call.1} parent=11 // pred_check_branch
          %341 = sbr.rel (%p339) target = $region44
        $region43: #{tpu_custom_call.1} parent=11 // pred_region
          %s343 = ssub.s32 16, 16
          %344 = vsyncadd [#allocation10], %s343
          %s346 = sshll.u32 [#allocation11], 4
          %s347 = int_to_ptr.vmem [resolvable:$true] %s346
          %349 = dma.hbm_to_vmem [thread:$0]  %s8, 16, %s347, [#allocation10]
        $region44: #{tpu_custom_call.1} parent=11 // pred_fallthru
          _
        // Predicated region
        $region45: #{tpu_custom_call.1} parent=11 // pred_check
          %p350 = pneg %p249
        $region46: #{tpu_custom_call.1} parent=11 // pred_check_branch
          %352 = sbr.rel (%p350) target = $region48
        $region47: #{tpu_custom_call.1} parent=11 // pred_region
          _
        $region48: #{tpu_custom_call.1} parent=11 // pred_fallthru
          _
      $region12: #{tpu_custom_call.1} parent=5 // pred_fallthru
        _
      %p353 = scmp.lt.s32.totalorder %s22, 2
      // Predicated region
      $region49: #{tpu_custom_call.1} parent=5 // pred_check
        %p354 = pneg %p353
      $region50: #{tpu_custom_call.1} parent=5 // pred_check_branch
        %356 = sbr.rel (%p354) target = $region52
      $region51: #{tpu_custom_call.1} parent=5 // pred_region
        // Predicated region
        $region53: #{tpu_custom_call.1} parent=51 // pred_check
          %p357 = pneg %p54
        $region54: #{tpu_custom_call.1} parent=51 // pred_check_branch
          %359 = sbr.rel (%p357) target = $region56
        $region55: #{tpu_custom_call.1} parent=51 // pred_region
          %p360 = scmp.lt.s32.totalorder %s29, 1
          %s361 = scalar_select %p360, %s29, 1
          %s362 = smul.addr %s361, 8
          %s363 = scalar_lea.vmem %s0, %s362
        $region56: #{tpu_custom_call.1} parent=51 // pred_fallthru
          _
      $region52: #{tpu_custom_call.1} parent=5 // pred_fallthru
        _
      %p364 = scmp.le.s32.totalorder 1, %s22
      %p365 = scmp.lt.s32.totalorder %s22, 3
      %p366 = pnand %p364, %p365
      %p367 = pneg %p366
      // Predicated region
      $region57: #{tpu_custom_call.1} parent=5 // pred_check
        _
      $region58: #{tpu_custom_call.1} parent=5 // pred_check_branch
        %369 = sbr.rel (%p366) target = $region60
      $region59: #{tpu_custom_call.1} parent=5 // pred_region
        %s370 = ssub.s32 %s22, 1
        // Predicated region
        $region61: #{tpu_custom_call.1} parent=59 // pred_check
          %p371 = pneg %p81
        $region62: #{tpu_custom_call.1} parent=59 // pred_check_branch
          %373 = sbr.rel (%p371) target = $region64
        $region63: #{tpu_custom_call.1} parent=59 // pred_region
          %374 = dma.done [#allocation7], 16
        $region64: #{tpu_custom_call.1} parent=59 // pred_fallthru
          _
        // Predicated region
        $region65: #{tpu_custom_call.1} parent=59 // pred_check
          %p375 = pneg %p186
        $region66: #{tpu_custom_call.1} parent=59 // pred_check_branch
          %377 = sbr.rel (%p375) target = $region68
        $region67: #{tpu_custom_call.1} parent=59 // pred_region
          %378 = dma.done [#allocation5], 256
        $region68: #{tpu_custom_call.1} parent=59 // pred_fallthru
          _
        // Predicated region
        $region69: #{tpu_custom_call.1} parent=59 // pred_check
          %p379 = pneg %p207
        $region70: #{tpu_custom_call.1} parent=59 // pred_check_branch
          %381 = sbr.rel (%p379) target = $region72
        $region71: #{tpu_custom_call.1} parent=59 // pred_region
          %382 = dma.done [#allocation10], 256
        $region72: #{tpu_custom_call.1} parent=59 // pred_fallthru
          _
        // Predicated region
        $region73: #{tpu_custom_call.1} parent=59 // pred_check
          %p383 = pneg %p228
        $region74: #{tpu_custom_call.1} parent=59 // pred_check_branch
          %385 = sbr.rel (%p383) target = $region76
        $region75: #{tpu_custom_call.1} parent=59 // pred_region
          %386 = dma.done [#allocation10], 16
        $region76: #{tpu_custom_call.1} parent=59 // pred_fallthru
          _
        %387 = sfence
        %p388 = scmp.lt.s32.totalorder %s31, 1
        %s389 = scalar_select %p388, %s31, 1
        %s390 = smul.addr %s389, 8
        %s391 = scalar_lea.vmem %s0, %s390
        %p392 = pneg %p60
        %p393 = pneg %p57
        %p394 = pneg %p81
        %p395 = pneg %p78
        %p396 = pneg %p102
        %p397 = pneg %p99
        %p398 = pneg %p123
        %p399 = pneg %p120
        %p400 = pneg %p144
        %p401 = pneg %p141
        %p402 = pneg %p165
        %p403 = pneg %p162
        %p404 = pneg %p186
        %p405 = pneg %p183
        %p406 = pneg %p207
        %p407 = pneg %p204
        %p408 = pneg %p228
        %p409 = pneg %p225
        %p410 = pneg %p249
        %p411 = pneg %p246
        %p412 = pneg %p277
        %p413 = pneg %p274
        %s414 = sand.u32 %s264, 1
        %s415 = scalar_lea.sflag [#allocation6], %s414
        %s416 = sand.u32 %s264, 1
        %s417 = smul.addr %s416, 8
        %s418 = scalar_lea.vmem [#allocation12], %s417
        %p419 = scmp.lt.s32.totalorder %s31, 1
        %s420 = scalar_select %p419, %s31, 1
        %s421 = smul.addr %s420, 8
        %s422 = scalar_lea.vmem %s0, %s421
        %s424 = sld [smem:[#allocation4]]
        %s425 = sld [smem:[#allocation4 + $0x1]]
        %v426 = vld [vmem:[%s2] sm:$0xff]
        %v427 = vld [vmem:[%s2 + $0x8] sm:$0x1]
        %p428 = scmp.eq.s32.totalorder %s32, 0
        // Predicated region
        $region77: #{tpu_custom_call.1} parent=59 // pred_check
          %p429 = pneg %p428
        $region78: #{tpu_custom_call.1} parent=59 // pred_check_branch
          %431 = sbr.rel (%p429) target = $region80
        $region79: #{tpu_custom_call.1} parent=59 // pred_region
          %v432 = vld [vmem:[%s422] sm:$0xff]
          %v433 = vstv %s424
          %v434 = vmul.f32 %v433, %v432
          %v435 = vtanh.pop %v434
          %v436 = vlaneseq
          %v437 = vshrl.u32 %v436, 7
          %v438 = vsub.s32 0, %v437
          %v439 = vrot.slane %v426, %v438
          %v440 = vmul.f32 %v439, %v435
          %v441 = vlaneseq
          %v442 = vshrl.u32 %v441, 7
          %v443 = vsub.s32 1, %v442
          %v444 = vrot.slane %v426, %v443
          %v445 = vadd.f32 %v440, %v444
          %v446 = vpack.c.bf16 %v445, %v445
          %v447 = vld [vmem:[%s4] sm:$0xf]
          %v448 = vld [vmem:[%s4 + $0x4] sm:$0xf]
          %v449 = vld [vmem:[%s4 + $0x8] sm:$0xf]
          %v450 = vld [vmem:[%s4 + $0xc] sm:$0xf]
          %v451 = vlaneseq
          %v452 = vshrl.u32 %v451, 7
          %v453 = vsub.s32 3, %v452
          %v454 = vrot.slane %v426, %v453
          %v459 = vunpack.c.l.b16 %v447
          %v460 = vunpack.c.l.b16 %v448
          %v461 = vunpack.c.l.b16 %v449
          %v462 = vunpack.c.l.b16 %v450
          %v463 = vpack.c.b16 %v460, %v459
          %v464 = vpack.c.b16 %v462, %v461
          %vm467 = vcmask 261120
          %v469 = vsel %vm467, %v446, 0
          %471 = vmatprep.subr.bf16.mxu0 0
          %472 = vmatpush1.bf16.msra.mxu0 0
          %473 = vmatprep.subr.bf16.mxu0 0
          %474 = vmatpush1.bf16.msra.mxu0 0
          %475 = vmatprep.subr.bf16.mxu0 0
          %476 = vmatpush1.bf16.msra.mxu0 0
          %477 = vmatprep.subr.bf16.mxu0 0
          %478 = vmatpush1.bf16.msra.mxu0 0
          %479 = vmatprep.subr.bf16.mxu0 0
          %480 = vmatpush1.bf16.msra.mxu0 0
          %481 = vmatprep.subr.bf16.mxu0 0
          %482 = vmatpush1.bf16.msra.mxu0 0
          %483 = vmatprep.subr.bf16.mxu0 0
          %484 = vmatpush1.bf16.msra.mxu0 %v464
          %485 = vmatprep.subr.bf16.mxu0 0
          %486 = vmatpush1.bf16.msra.mxu0 %v463
          %487 = vmatprep.subr.bf16.mxu0 0
          %488 = vmatpush2.bf16.msra.mxu0 0
          %489 = vmatprep.subr.bf16.mxu0 0
          %490 = vmatpush2.bf16.msra.mxu0 0
          %491 = vmatprep.subr.bf16.mxu0 0
          %492 = vmatpush2.bf16.msra.mxu0 0
          %493 = vmatprep.subr.bf16.mxu0 0
          %494 = vmatpush2.bf16.msra.mxu0 0
          %495 = vmatprep.subr.bf16.mxu0 0
          %496 = vmatpush2.bf16.msra.mxu0 0
          %497 = vmatprep.subr.bf16.mxu0 0
          %498 = vmatpush2.bf16.msra.mxu0 0
          %499 = vmatprep.subr.bf16.mxu0 0
          %500 = vmatpush2.bf16.msra.mxu0 0
          %501 = vmatprep.subr.bf16.mxu0 0
          %502 = vmatpush2.bf16.msra.mxu0 0
          %503 = vmatprep.mubr.bf16.mxu0 0
          %504 = vmatmul.mubr.bf16.gmra.mxu0 %v469
          %v505 = vpop.f32.mrf.mxu0
          %v506 = vadd.f32 %v454, %v505
          %v507 = vpop.f32.mrf.mxu0
          %v508 = vpop.f32.mrf.mxu0
          %v509 = vpop.f32.mrf.mxu0
          %510 = vdwg.mxu0
          %v511 = vld [vmem:[%s5] sm:$0xf]
          %v512 = vld [vmem:[%s5 + $0x4] sm:$0xf]
          %v513 = vld [vmem:[%s5 + $0x8] sm:$0xf]
          %v514 = vld [vmem:[%s5 + $0xc] sm:$0xf]
          %v515 = vlaneseq
          %v516 = vshrl.u32 %v515, 7
          %v517 = vsub.s32 4, %v516
          %v518 = vrot.slane %v426, %v517
          %v523 = vunpack.c.l.b16 %v511
          %v524 = vunpack.c.l.b16 %v512
          %v525 = vunpack.c.l.b16 %v513
          %v526 = vunpack.c.l.b16 %v514
          %v527 = vpack.c.b16 %v524, %v523
          %v528 = vpack.c.b16 %v526, %v525
          %531 = vmatprep.subr.bf16.mxu0 0
          %532 = vmatpush1.bf16.msra.mxu0 0
          %533 = vmatprep.subr.bf16.mxu0 0
          %534 = vmatpush1.bf16.msra.mxu0 0
          %535 = vmatprep.subr.bf16.mxu0 0
          %536 = vmatpush1.bf16.msra.mxu0 0
          %537 = vmatprep.subr.bf16.mxu0 0
          %538 = vmatpush1.bf16.msra.mxu0 0
          %539 = vmatprep.subr.bf16.mxu0 0
          %540 = vmatpush1.bf16.msra.mxu0 0
          %541 = vmatprep.subr.bf16.mxu0 0
          %542 = vmatpush1.bf16.msra.mxu0 0
          %543 = vmatprep.subr.bf16.mxu0 0
          %544 = vmatpush1.bf16.msra.mxu0 %v528
          %545 = vmatprep.subr.bf16.mxu0 0
          %546 = vmatpush1.bf16.msra.mxu0 %v527
          %547 = vmatprep.subr.bf16.mxu0 0
          %548 = vmatpush2.bf16.msra.mxu0 0
          %549 = vmatprep.subr.bf16.mxu0 0
          %550 = vmatpush2.bf16.msra.mxu0 0
          %551 = vmatprep.subr.bf16.mxu0 0
          %552 = vmatpush2.bf16.msra.mxu0 0
          %553 = vmatprep.subr.bf16.mxu0 0
          %554 = vmatpush2.bf16.msra.mxu0 0
          %555 = vmatprep.subr.bf16.mxu0 0
          %556 = vmatpush2.bf16.msra.mxu0 0
          %557 = vmatprep.subr.bf16.mxu0 0
          %558 = vmatpush2.bf16.msra.mxu0 0
          %559 = vmatprep.subr.bf16.mxu0 0
          %560 = vmatpush2.bf16.msra.mxu0 0
          %561 = vmatprep.subr.bf16.mxu0 0
          %562 = vmatpush2.bf16.msra.mxu0 0
          %563 = vmatprep.mubr.bf16.mxu0 0
          %564 = vmatmul.mubr.bf16.gmra.mxu0 %v469
          %v565 = vpop.f32.mrf.mxu0
          %v566 = vadd.f32 %v518, %v565
          %v567 = vpop.f32.mrf.mxu0
          %v568 = vpop.f32.mrf.mxu0
          %v569 = vpop.f32.mrf.mxu0
          %570 = vdwg.mxu0
          %572 = vrot.lane.b32.xlu0 %v506, 120
          %v573 = vpop.permute.xlu0 %572
          %575 = vrot.lane.b32.xlu0 %v506, 112
          %v576 = vpop.permute.xlu0 %575
          %578 = vrot.lane.b32.xlu0 %v506, 104
          %v579 = vpop.permute.xlu0 %578
          %v581 = vcombine.low %v506, %v576
          %v582 = vcombine.high %v506, %v576
          %v584 = vunpack.c.l.s4 1983009808
          %v585 = vunpack.c.0.s8 %v584
          %v586 = vlaneseq
          %v587 = vshrl.u32 %v586, 7
          %v588 = vsub.s32 %v585, %v587
          %v589 = vrot.slane %v581, %v588
          %v591 = vunpack.c.l.s4 1983009808
          %v592 = vunpack.c.0.s8 %v591
          %v593 = vlaneseq
          %v594 = vshrl.u32 %v593, 7
          %v595 = vsub.s32 %v592, %v594
          %v596 = vrot.slane %v582, %v595
          %v597 = vcombine.low %v573, %v579
          %v598 = vcombine.high %v573, %v579
          %v600 = vunpack.c.l.s4 1983009808
          %v601 = vunpack.c.0.s8 %v600
          %v602 = vlaneseq
          %v603 = vshrl.u32 %v602, 7
          %v604 = vsub.s32 %v601, %v603
          %v605 = vrot.slane %v597, %v604
          %v607 = vunpack.c.l.s4 1983009808
          %v608 = vunpack.c.0.s8 %v607
          %v609 = vlaneseq
          %v610 = vshrl.u32 %v609, 7
          %v611 = vsub.s32 %v608, %v610
          %v612 = vrot.slane %v598, %v611
          %v613 = vcombine.low %v589, %v605
          %v614 = vcombine.high %v589, %v605
          %v616 = vunpack.c.l.s4 1934713408
          %v617 = vunpack.c.0.s8 %v616
          %v618 = vlaneseq
          %v619 = vshrl.u32 %v618, 7
          %v620 = vsub.s32 %v617, %v619
          %v621 = vrot.slane %v613, %v620
          %v623 = vunpack.c.l.s4 1934713408
          %v624 = vunpack.c.0.s8 %v623
          %v625 = vlaneseq
          %v626 = vshrl.u32 %v625, 7
          %v627 = vsub.s32 %v624, %v626
          %v628 = vrot.slane %v614, %v627
          %v629 = vcombine.low %v596, %v612
          %v630 = vcombine.high %v596, %v612
          %v632 = vunpack.c.l.s4 1934713408
          %v633 = vunpack.c.0.s8 %v632
          %v634 = vlaneseq
          %v635 = vshrl.u32 %v634, 7
          %v636 = vsub.s32 %v633, %v635
          %v637 = vrot.slane %v629, %v636
          %v639 = vunpack.c.l.s4 1934713408
          %v640 = vunpack.c.0.s8 %v639
          %v641 = vlaneseq
          %v642 = vshrl.u32 %v641, 7
          %v643 = vsub.s32 %v640, %v642
          %v644 = vrot.slane %v630, %v643
          %v645 = vcombine.high %v621, 0.0
          %v646 = vcombine.high %v628, 0.0
          %v647 = vcombine.high %v637, 0.0
          %v648 = vcombine.high %v644, 0.0
          %v649 = vcombine.low %v621, %v628
          %v651 = vunpack.c.l.s4 1983009808
          %v652 = vunpack.c.0.s8 %v651
          %v653 = vlaneseq
          %v654 = vshrl.u32 %v653, 7
          %v655 = vsub.s32 %v652, %v654
          %v656 = vrot.slane %v649, %v655
          %v657 = vcombine.low %v645, %v646
          %v659 = vunpack.c.l.s4 1983009808
          %v660 = vunpack.c.0.s8 %v659
          %v661 = vlaneseq
          %v662 = vshrl.u32 %v661, 7
          %v663 = vsub.s32 %v660, %v662
          %v664 = vrot.slane %v657, %v663
          %v665 = vcombine.low %v637, %v644
          %v667 = vunpack.c.l.s4 1983009808
          %v668 = vunpack.c.0.s8 %v667
          %v669 = vlaneseq
          %v670 = vshrl.u32 %v669, 7
          %v671 = vsub.s32 %v668, %v670
          %v672 = vrot.slane %v665, %v671
          %v673 = vcombine.low %v647, %v648
          %v675 = vunpack.c.l.s4 1983009808
          %v676 = vunpack.c.0.s8 %v675
          %v677 = vlaneseq
          %v678 = vshrl.u32 %v677, 7
          %v679 = vsub.s32 %v676, %v678
          %v680 = vrot.slane %v673, %v679
          %v681 = vcombine.low %v656, %v664
          %v682 = vcombine.high %v656, %v664
          %v684 = vunpack.c.l.s4 1934713408
          %v685 = vunpack.c.0.s8 %v684
          %v686 = vlaneseq
          %v687 = vshrl.u32 %v686, 7
          %v688 = vsub.s32 %v685, %v687
          %v689 = vrot.slane %v681, %v688
          %v691 = vunpack.c.l.s4 1934713408
          %v692 = vunpack.c.0.s8 %v691
          %v693 = vlaneseq
          %v694 = vshrl.u32 %v693, 7
          %v695 = vsub.s32 %v692, %v694
          %v696 = vrot.slane %v682, %v695
          %v697 = vcombine.low %v672, %v680
          %v698 = vcombine.high %v672, %v680
          %v700 = vunpack.c.l.s4 1934713408
          %v701 = vunpack.c.0.s8 %v700
          %v702 = vlaneseq
          %v703 = vshrl.u32 %v702, 7
          %v704 = vsub.s32 %v701, %v703
          %v705 = vrot.slane %v697, %v704
          %v707 = vunpack.c.l.s4 1934713408
          %v708 = vunpack.c.0.s8 %v707
          %v709 = vlaneseq
          %v710 = vshrl.u32 %v709, 7
          %v711 = vsub.s32 %v708, %v710
          %v712 = vrot.slane %v698, %v711
          %v713 = vcombine.low %v689, %v705
          %v714 = vcombine.high %v689, %v705
          %v715 = vcombine.low %v696, %v712
          %v716 = vcombine.high %v696, %v712
          %v717 = vpack.c.bf16 %v713, %v713
          %v718 = vpack.c.bf16 %v714, %v714
          %v719 = vpack.c.bf16 %v715, %v715
          %v720 = vpack.c.bf16 %v716, %v716
          %vm721 = vcmask 60416
          %722 = vst.msk [vmem:[#allocation2] sm:$0xf] %vm721, %v717
          %723 = vst.msk [vmem:[#allocation2 + $0x4] sm:$0xf] %vm721, %v718
          %724 = vst.msk [vmem:[#allocation2 + $0x8] sm:$0xf] %vm721, %v719
          %725 = vst.msk [vmem:[#allocation2 + $0xc] sm:$0xf] %vm721, %v720
          %727 = vrot.lane.b32.xlu0 %v566, 120
          %v728 = vpop.permute.xlu0 %727
          %730 = vrot.lane.b32.xlu0 %v566, 112
          %v731 = vpop.permute.xlu0 %730
          %733 = vrot.lane.b32.xlu0 %v566, 104
          %v734 = vpop.permute.xlu0 %733
          %v736 = vcombine.low %v566, %v731
          %v737 = vcombine.high %v566, %v731
          %v739 = vunpack.c.l.s4 1983009808
          %v740 = vunpack.c.0.s8 %v739
          %v741 = vlaneseq
          %v742 = vshrl.u32 %v741, 7
          %v743 = vsub.s32 %v740, %v742
          %v744 = vrot.slane %v736, %v743
          %v746 = vunpack.c.l.s4 1983009808
          %v747 = vunpack.c.0.s8 %v746
          %v748 = vlaneseq
          %v749 = vshrl.u32 %v748, 7
          %v750 = vsub.s32 %v747, %v749
          %v751 = vrot.slane %v737, %v750
          %v752 = vcombine.low %v728, %v734
          %v753 = vcombine.high %v728, %v734
          %v755 = vunpack.c.l.s4 1983009808
          %v756 = vunpack.c.0.s8 %v755
          %v757 = vlaneseq
          %v758 = vshrl.u32 %v757, 7
          %v759 = vsub.s32 %v756, %v758
          %v760 = vrot.slane %v752, %v759
          %v762 = vunpack.c.l.s4 1983009808
          %v763 = vunpack.c.0.s8 %v762
          %v764 = vlaneseq
          %v765 = vshrl.u32 %v764, 7
          %v766 = vsub.s32 %v763, %v765
          %v767 = vrot.slane %v753, %v766
          %v768 = vcombine.low %v744, %v760
          %v769 = vcombine.high %v744, %v760
          %v771 = vunpack.c.l.s4 1934713408
          %v772 = vunpack.c.0.s8 %v771
          %v773 = vlaneseq
          %v774 = vshrl.u32 %v773, 7
          %v775 = vsub.s32 %v772, %v774
          %v776 = vrot.slane %v768, %v775
          %v778 = vunpack.c.l.s4 1934713408
          %v779 = vunpack.c.0.s8 %v778
          %v780 = vlaneseq
          %v781 = vshrl.u32 %v780, 7
          %v782 = vsub.s32 %v779, %v781
          %v783 = vrot.slane %v769, %v782
          %v784 = vcombine.low %v751, %v767
          %v785 = vcombine.high %v751, %v767
          %v787 = vunpack.c.l.s4 1934713408
          %v788 = vunpack.c.0.s8 %v787
          %v789 = vlaneseq
          %v790 = vshrl.u32 %v789, 7
          %v791 = vsub.s32 %v788, %v790
          %v792 = vrot.slane %v784, %v791
          %v794 = vunpack.c.l.s4 1934713408
          %v795 = vunpack.c.0.s8 %v794
          %v796 = vlaneseq
          %v797 = vshrl.u32 %v796, 7
          %v798 = vsub.s32 %v795, %v797
          %v799 = vrot.slane %v785, %v798
          %v800 = vcombine.high %v776, 0.0
          %v801 = vcombine.high %v783, 0.0
          %v802 = vcombine.high %v792, 0.0
          %v803 = vcombine.high %v799, 0.0
          %v804 = vcombine.low %v776, %v783
          %v806 = vunpack.c.l.s4 1983009808
          %v807 = vunpack.c.0.s8 %v806
          %v808 = vlaneseq
          %v809 = vshrl.u32 %v808, 7
          %v810 = vsub.s32 %v807, %v809
          %v811 = vrot.slane %v804, %v810
          %v812 = vcombine.low %v800, %v801
          %v814 = vunpack.c.l.s4 1983009808
          %v815 = vunpack.c.0.s8 %v814
          %v816 = vlaneseq
          %v817 = vshrl.u32 %v816, 7
          %v818 = vsub.s32 %v815, %v817
          %v819 = vrot.slane %v812, %v818
          %v820 = vcombine.low %v792, %v799
          %v822 = vunpack.c.l.s4 1983009808
          %v823 = vunpack.c.0.s8 %v822
          %v824 = vlaneseq
          %v825 = vshrl.u32 %v824, 7
          %v826 = vsub.s32 %v823, %v825
          %v827 = vrot.slane %v820, %v826
          %v828 = vcombine.low %v802, %v803
          %v830 = vunpack.c.l.s4 1983009808
          %v831 = vunpack.c.0.s8 %v830
          %v832 = vlaneseq
          %v833 = vshrl.u32 %v832, 7
          %v834 = vsub.s32 %v831, %v833
          %v835 = vrot.slane %v828, %v834
          %v836 = vcombine.low %v811, %v819
          %v837 = vcombine.high %v811, %v819
          %v839 = vunpack.c.l.s4 1934713408
          %v840 = vunpack.c.0.s8 %v839
          %v841 = vlaneseq
          %v842 = vshrl.u32 %v841, 7
          %v843 = vsub.s32 %v840, %v842
          %v844 = vrot.slane %v836, %v843
          %v846 = vunpack.c.l.s4 1934713408
          %v847 = vunpack.c.0.s8 %v846
          %v848 = vlaneseq
          %v849 = vshrl.u32 %v848, 7
          %v850 = vsub.s32 %v847, %v849
          %v851 = vrot.slane %v837, %v850
          %v852 = vcombine.low %v827, %v835
          %v853 = vcombine.high %v827, %v835
          %v855 = vunpack.c.l.s4 1934713408
          %v856 = vunpack.c.0.s8 %v855
          %v857 = vlaneseq
          %v858 = vshrl.u32 %v857, 7
          %v859 = vsub.s32 %v856, %v858
          %v860 = vrot.slane %v852, %v859
          %v862 = vunpack.c.l.s4 1934713408
          %v863 = vunpack.c.0.s8 %v862
          %v864 = vlaneseq
          %v865 = vshrl.u32 %v864, 7
          %v866 = vsub.s32 %v863, %v865
          %v867 = vrot.slane %v853, %v866
          %v868 = vcombine.low %v844, %v860
          %v869 = vcombine.high %v844, %v860
          %v870 = vcombine.low %v851, %v867
          %v871 = vcombine.high %v851, %v867
          %v872 = vpack.c.bf16 %v868, %v868
          %v873 = vpack.c.bf16 %v869, %v869
          %v874 = vpack.c.bf16 %v870, %v870
          %v875 = vpack.c.bf16 %v871, %v871
          %876 = vst.msk [vmem:[#allocation3] sm:$0xf] %vm721, %v872
          %877 = vst.msk [vmem:[#allocation3 + $0x4] sm:$0xf] %vm721, %v873
          %878 = vst.msk [vmem:[#allocation3 + $0x8] sm:$0xf] %vm721, %v874
          %879 = vst.msk [vmem:[#allocation3 + $0xc] sm:$0xf] %vm721, %v875
        $region80: #{tpu_custom_call.1} parent=59 // pred_fallthru
          _
        %s880 = smul.u32 %s32, 8
        %s881 = scalar_lea.vmem %s422, %s880
        %v882 = vld [vmem:[%s881] sm:$0xff]
        %v883 = vstv %s424
        %v884 = vmul.f32 %v883, %v882
        %v885 = vtanh.pop %v884
        %v886 = vlaneseq
        %v887 = vshrl.u32 %v886, 7
        %v888 = vsub.s32 0, %v887
        %v889 = vrot.slane %v426, %v888
        %v890 = vmul.f32 %v889, %v885
        %v891 = vlaneseq
        %v892 = vshrl.u32 %v891, 7
        %v893 = vsub.s32 1, %v892
        %v894 = vrot.slane %v426, %v893
        %v895 = vadd.f32 %v890, %v894
        %v896 = vpack.c.bf16 %v895, %v895
        %v897 = vld [vmem:[%s3] sm:$0xf]
        %v898 = vld [vmem:[%s3 + $0x4] sm:$0xf]
        %v899 = vld [vmem:[%s3 + $0x8] sm:$0xf]
        %v900 = vld [vmem:[%s3 + $0xc] sm:$0xf]
        %v901 = vlaneseq
        %v902 = vshrl.u32 %v901, 7
        %v903 = vsub.s32 2, %v902
        %v904 = vrot.slane %v426, %v903
        %v909 = vunpack.c.l.b16 %v897
        %v910 = vunpack.c.l.b16 %v898
        %v911 = vunpack.c.l.b16 %v899
        %v912 = vunpack.c.l.b16 %v900
        %v913 = vpack.c.b16 %v910, %v909
        %v914 = vpack.c.b16 %v912, %v911
        %vm917 = vcmask 261120
        %v919 = vsel %vm917, %v896, 0
        %921 = vmatprep.subr.bf16.mxu0 0
        %922 = vmatpush1.bf16.msra.mxu0 0
        %923 = vmatprep.subr.bf16.mxu0 0
        %924 = vmatpush1.bf16.msra.mxu0 0
        %925 = vmatprep.subr.bf16.mxu0 0
        %926 = vmatpush1.bf16.msra.mxu0 0
        %927 = vmatprep.subr.bf16.mxu0 0
        %928 = vmatpush1.bf16.msra.mxu0 0
        %929 = vmatprep.subr.bf16.mxu0 0
        %930 = vmatpush1.bf16.msra.mxu0 0
        %931 = vmatprep.subr.bf16.mxu0 0
        %932 = vmatpush1.bf16.msra.mxu0 0
        %933 = vmatprep.subr.bf16.mxu0 0
        %934 = vmatpush1.bf16.msra.mxu0 %v914
        %935 = vmatprep.subr.bf16.mxu0 0
        %936 = vmatpush1.bf16.msra.mxu0 %v913
        %937 = vmatprep.subr.bf16.mxu0 0
        %938 = vmatpush2.bf16.msra.mxu0 0
        %939 = vmatprep.subr.bf16.mxu0 0
        %940 = vmatpush2.bf16.msra.mxu0 0
        %941 = vmatprep.subr.bf16.mxu0 0
        %942 = vmatpush2.bf16.msra.mxu0 0
        %943 = vmatprep.subr.bf16.mxu0 0
        %944 = vmatpush2.bf16.msra.mxu0 0
        %945 = vmatprep.subr.bf16.mxu0 0
        %946 = vmatpush2.bf16.msra.mxu0 0
        %947 = vmatprep.subr.bf16.mxu0 0
        %948 = vmatpush2.bf16.msra.mxu0 0
        %949 = vmatprep.subr.bf16.mxu0 0
        %950 = vmatpush2.bf16.msra.mxu0 0
        %951 = vmatprep.subr.bf16.mxu0 0
        %952 = vmatpush2.bf16.msra.mxu0 0
        %953 = vmatprep.mubr.bf16.mxu0 0
        %954 = vmatmul.mubr.bf16.gmra.mxu0 %v919
        %v955 = vpop.f32.mrf.mxu0
        %v956 = vadd.f32 %v904, %v955
        %v957 = vpop.f32.mrf.mxu0
        %v958 = vpop.f32.mrf.mxu0
        %v959 = vpop.f32.mrf.mxu0
        %960 = vdwg.mxu0
        %962 = vrot.lane.b32.xlu0 %v956, 120
        %v963 = vpop.permute.xlu0 %962
        %965 = vrot.lane.b32.xlu0 %v956, 112
        %v966 = vpop.permute.xlu0 %965
        %968 = vrot.lane.b32.xlu0 %v956, 104
        %v969 = vpop.permute.xlu0 %968
        %v971 = vcombine.low %v956, %v966
        %v972 = vcombine.high %v956, %v966
        %v974 = vunpack.c.l.s4 1983009808
        %v975 = vunpack.c.0.s8 %v974
        %v976 = vlaneseq
        %v977 = vshrl.u32 %v976, 7
        %v978 = vsub.s32 %v975, %v977
        %v979 = vrot.slane %v971, %v978
        %v981 = vunpack.c.l.s4 1983009808
        %v982 = vunpack.c.0.s8 %v981
        %v983 = vlaneseq
        %v984 = vshrl.u32 %v983, 7
        %v985 = vsub.s32 %v982, %v984
        %v986 = vrot.slane %v972, %v985
        %v987 = vcombine.low %v963, %v969
        %v988 = vcombine.high %v963, %v969
        %v990 = vunpack.c.l.s4 1983009808
        %v991 = vunpack.c.0.s8 %v990
        %v992 = vlaneseq
        %v993 = vshrl.u32 %v992, 7
        %v994 = vsub.s32 %v991, %v993
        %v995 = vrot.slane %v987, %v994
        %v997 = vunpack.c.l.s4 1983009808
        %v998 = vunpack.c.0.s8 %v997
        %v999 = vlaneseq
        %v1000 = vshrl.u32 %v999, 7
        %v1001 = vsub.s32 %v998, %v1000
        %v1002 = vrot.slane %v988, %v1001
        %v1003 = vcombine.low %v979, %v995
        %v1004 = vcombine.high %v979, %v995
        %v1006 = vunpack.c.l.s4 1934713408
        %v1007 = vunpack.c.0.s8 %v1006
        %v1008 = vlaneseq
        %v1009 = vshrl.u32 %v1008, 7
        %v1010 = vsub.s32 %v1007, %v1009
        %v1011 = vrot.slane %v1003, %v1010
        %v1013 = vunpack.c.l.s4 1934713408
        %v1014 = vunpack.c.0.s8 %v1013
        %v1015 = vlaneseq
        %v1016 = vshrl.u32 %v1015, 7
        %v1017 = vsub.s32 %v1014, %v1016
        %v1018 = vrot.slane %v1004, %v1017
        %v1019 = vcombine.low %v986, %v1002
        %v1020 = vcombine.high %v986, %v1002
        %v1022 = vunpack.c.l.s4 1934713408
        %v1023 = vunpack.c.0.s8 %v1022
        %v1024 = vlaneseq
        %v1025 = vshrl.u32 %v1024, 7
        %v1026 = vsub.s32 %v1023, %v1025
        %v1027 = vrot.slane %v1019, %v1026
        %v1029 = vunpack.c.l.s4 1934713408
        %v1030 = vunpack.c.0.s8 %v1029
        %v1031 = vlaneseq
        %v1032 = vshrl.u32 %v1031, 7
        %v1033 = vsub.s32 %v1030, %v1032
        %v1034 = vrot.slane %v1020, %v1033
        %v1035 = vcombine.high %v1011, 0.0
        %v1036 = vcombine.high %v1018, 0.0
        %v1037 = vcombine.high %v1027, 0.0
        %v1038 = vcombine.high %v1034, 0.0
        %v1039 = vcombine.low %v1011, %v1018
        %v1041 = vunpack.c.l.s4 1983009808
        %v1042 = vunpack.c.0.s8 %v1041
        %v1043 = vlaneseq
        %v1044 = vshrl.u32 %v1043, 7
        %v1045 = vsub.s32 %v1042, %v1044
        %v1046 = vrot.slane %v1039, %v1045
        %v1047 = vcombine.low %v1035, %v1036
        %v1049 = vunpack.c.l.s4 1983009808
        %v1050 = vunpack.c.0.s8 %v1049
        %v1051 = vlaneseq
        %v1052 = vshrl.u32 %v1051, 7
        %v1053 = vsub.s32 %v1050, %v1052
        %v1054 = vrot.slane %v1047, %v1053
        %v1055 = vcombine.low %v1027, %v1034
        %v1057 = vunpack.c.l.s4 1983009808
        %v1058 = vunpack.c.0.s8 %v1057
        %v1059 = vlaneseq
        %v1060 = vshrl.u32 %v1059, 7
        %v1061 = vsub.s32 %v1058, %v1060
        %v1062 = vrot.slane %v1055, %v1061
        %v1063 = vcombine.low %v1037, %v1038
        %v1065 = vunpack.c.l.s4 1983009808
        %v1066 = vunpack.c.0.s8 %v1065
        %v1067 = vlaneseq
        %v1068 = vshrl.u32 %v1067, 7
        %v1069 = vsub.s32 %v1066, %v1068
        %v1070 = vrot.slane %v1063, %v1069
        %v1071 = vcombine.low %v1046, %v1054
        %v1072 = vcombine.high %v1046, %v1054
        %v1074 = vunpack.c.l.s4 1934713408
        %v1075 = vunpack.c.0.s8 %v1074
        %v1076 = vlaneseq
        %v1077 = vshrl.u32 %v1076, 7
        %v1078 = vsub.s32 %v1075, %v1077
        %v1079 = vrot.slane %v1071, %v1078
        %v1081 = vunpack.c.l.s4 1934713408
        %v1082 = vunpack.c.0.s8 %v1081
        %v1083 = vlaneseq
        %v1084 = vshrl.u32 %v1083, 7
        %v1085 = vsub.s32 %v1082, %v1084
        %v1086 = vrot.slane %v1072, %v1085
        %v1087 = vcombine.low %v1062, %v1070
        %v1088 = vcombine.high %v1062, %v1070
        %v1090 = vunpack.c.l.s4 1934713408
        %v1091 = vunpack.c.0.s8 %v1090
        %v1092 = vlaneseq
        %v1093 = vshrl.u32 %v1092, 7
        %v1094 = vsub.s32 %v1091, %v1093
        %v1095 = vrot.slane %v1087, %v1094
        %v1097 = vunpack.c.l.s4 1934713408
        %v1098 = vunpack.c.0.s8 %v1097
        %v1099 = vlaneseq
        %v1100 = vshrl.u32 %v1099, 7
        %v1101 = vsub.s32 %v1098, %v1100
        %v1102 = vrot.slane %v1088, %v1101
        %v1103 = vcombine.low %v1079, %v1095
        %v1104 = vcombine.high %v1079, %v1095
        %v1105 = vcombine.low %v1086, %v1102
        %v1106 = vcombine.high %v1086, %v1102
        %v1107 = vmul.f32 %v1103, 0.35355338
        %v1108 = vmul.f32 %v1104, 0.35355338
        %v1109 = vmul.f32 %v1105, 0.35355338
        %v1110 = vmul.f32 %v1106, 0.35355338
        %v1111 = vpack.c.bf16 %v1107, %v1107
        %v1112 = vpack.c.bf16 %v1108, %v1108
        %v1113 = vpack.c.bf16 %v1109, %v1109
        %v1114 = vpack.c.bf16 %v1110, %v1110
        %v1115 = vld [vmem:[#allocation2] sm:$0xf]
        %v1116 = vld [vmem:[#allocation2 + $0x4] sm:$0xf]
        %v1117 = vld [vmem:[#allocation2 + $0x8] sm:$0xf]
        %v1118 = vld [vmem:[#allocation2 + $0xc] sm:$0xf]
        %vm1119 = vcmask 64512
        %v1121 = vsel %vm1119, %v1111, 0
        %v1124 = vsel %vm1119, %v1115, 0
        %1126 = vmatprep.subr.bf16.mxu0 0
        %1127 = vmatpush1.bf16.xpose.msra.mxu0 0
        %1128 = vmatprep.subr.bf16.mxu0 0
        %1129 = vmatpush1.bf16.xpose.msra.mxu0 0
        %1130 = vmatprep.subr.bf16.mxu0 0
        %1131 = vmatpush1.bf16.xpose.msra.mxu0 0
        %1132 = vmatprep.subr.bf16.mxu0 0
        %1133 = vmatpush1.bf16.xpose.msra.mxu0 0
        %1134 = vmatprep.subr.bf16.mxu0 0
        %1135 = vmatpush1.bf16.xpose.msra.mxu0 0
        %1136 = vmatprep.subr.bf16.mxu0 0
        %1137 = vmatpush1.bf16.xpose.msra.mxu0 0
        %1138 = vmatprep.subr.bf16.mxu0 0
        %1139 = vmatpush1.bf16.xpose.msra.mxu0 0
        %1140 = vmatprep.subr.bf16.mxu0 0
        %1141 = vmatpush1.bf16.xpose.msra.mxu0 %v1124
        %1142 = vmatprep.subr.bf16.mxu0 0
        %1143 = vmatpush2.bf16.xpose.msra.mxu0 0
        %1144 = vmatprep.subr.bf16.mxu0 0
        %1145 = vmatpush2.bf16.xpose.msra.mxu0 0
        %1146 = vmatprep.subr.bf16.mxu0 0
        %1147 = vmatpush2.bf16.xpose.msra.mxu0 0
        %1148 = vmatprep.subr.bf16.mxu0 0
        %1149 = vmatpush2.bf16.xpose.msra.mxu0 0
        %1150 = vmatprep.subr.bf16.mxu0 0
        %1151 = vmatpush2.bf16.xpose.msra.mxu0 0
        %1152 = vmatprep.subr.bf16.mxu0 0
        %1153 = vmatpush2.bf16.xpose.msra.mxu0 0
        %1154 = vmatprep.subr.bf16.mxu0 0
        %1155 = vmatpush2.bf16.xpose.msra.mxu0 0
        %1156 = vmatprep.subr.bf16.mxu0 0
        %1157 = vmatpush2.bf16.xpose.msra.mxu0 0
        %1158 = vmatprep.mubr.bf16.mxu0 0
        %1159 = vmatmul.mubr.bf16.gmra.mxu0 %v1121
        %v1160 = vpop.f32.mrf.mxu0
        %v1161 = vadd.f32 0.0, %v1160
        %v1162 = vpop.f32.mrf.mxu0
        %v1163 = vpop.f32.mrf.mxu0
        %v1164 = vpop.f32.mrf.mxu0
        %1165 = vdwg.mxu0
        %v1167 = vsel %vm1119, %v1112, 0
        %v1170 = vsel %vm1119, %v1116, 0
        %1172 = vmatprep.subr.bf16.mxu0 0
        %1173 = vmatpush1.bf16.xpose.msra.mxu0 0
        %1174 = vmatprep.subr.bf16.mxu0 0
        %1175 = vmatpush1.bf16.xpose.msra.mxu0 0
        %1176 = vmatprep.subr.bf16.mxu0 0
        %1177 = vmatpush1.bf16.xpose.msra.mxu0 0
        %1178 = vmatprep.subr.bf16.mxu0 0
        %1179 = vmatpush1.bf16.xpose.msra.mxu0 0
        %1180 = vmatprep.subr.bf16.mxu0 0
        %1181 = vmatpush1.bf16.xpose.msra.mxu0 0
        %1182 = vmatprep.subr.bf16.mxu0 0
        %1183 = vmatpush1.bf16.xpose.msra.mxu0 0
        %1184 = vmatprep.subr.bf16.mxu0 0
        %1185 = vmatpush1.bf16.xpose.msra.mxu0 0
        %1186 = vmatprep.subr.bf16.mxu0 0
        %1187 = vmatpush1.bf16.xpose.msra.mxu0 %v1170
        %1188 = vmatprep.subr.bf16.mxu0 0
        %1189 = vmatpush2.bf16.xpose.msra.mxu0 0
        %1190 = vmatprep.subr.bf16.mxu0 0
        %1191 = vmatpush2.bf16.xpose.msra.mxu0 0
        %1192 = vmatprep.subr.bf16.mxu0 0
        %1193 = vmatpush2.bf16.xpose.msra.mxu0 0
        %1194 = vmatprep.subr.bf16.mxu0 0
        %1195 = vmatpush2.bf16.xpose.msra.mxu0 0
        %1196 = vmatprep.subr.bf16.mxu0 0
        %1197 = vmatpush2.bf16.xpose.msra.mxu0 0
        %1198 = vmatprep.subr.bf16.mxu0 0
        %1199 = vmatpush2.bf16.xpose.msra.mxu0 0
        %1200 = vmatprep.subr.bf16.mxu0 0
        %1201 = vmatpush2.bf16.xpose.msra.mxu0 0
        %1202 = vmatprep.subr.bf16.mxu0 0
        %1203 = vmatpush2.bf16.xpose.msra.mxu0 0
        %1204 = vmatprep.mubr.bf16.mxu0 0
        %1205 = vmatmul.mubr.bf16.gmra.mxu0 %v1167
        %v1206 = vpop.f32.mrf.mxu0
        %v1207 = vadd.f32 0.0, %v1206
        %v1208 = vpop.f32.mrf.mxu0
        %v1209 = vpop.f32.mrf.mxu0
        %v1210 = vpop.f32.mrf.mxu0
        %1211 = vdwg.mxu0
        %v1213 = vsel %vm1119, %v1113, 0
        %v1216 = vsel %vm1119, %v1117, 0
        %1218 = vmatprep.subr.bf16.mxu0 0
        %1219 = vmatpush1.bf16.xpose.msra.mxu0 0
        %1220 = vmatprep.subr.bf16.mxu0 0
        %1221 = vmatpush1.bf16.xpose.msra.mxu0 0
        %1222 = vmatprep.subr.bf16.mxu0 0
        %1223 = vmatpush1.bf16.xpose.msra.mxu0 0
        %1224 = vmatprep.subr.bf16.mxu0 0
        %1225 = vmatpush1.bf16.xpose.msra.mxu0 0
        %1226 = vmatprep.subr.bf16.mxu0 0
        %1227 = vmatpush1.bf16.xpose.msra.mxu0 0
        %1228 = vmatprep.subr.bf16.mxu0 0
        %1229 = vmatpush1.bf16.xpose.msra.mxu0 0
        %1230 = vmatprep.subr.bf16.mxu0 0
        %1231 = vmatpush1.bf16.xpose.msra.mxu0 0
        %1232 = vmatprep.subr.bf16.mxu0 0
        %1233 = vmatpush1.bf16.xpose.msra.mxu0 %v1216
        %1234 = vmatprep.subr.bf16.mxu0 0
        %1235 = vmatpush2.bf16.xpose.msra.mxu0 0
        %1236 = vmatprep.subr.bf16.mxu0 0
        %1237 = vmatpush2.bf16.xpose.msra.mxu0 0
        %1238 = vmatprep.subr.bf16.mxu0 0
        %1239 = vmatpush2.bf16.xpose.msra.mxu0 0
        %1240 = vmatprep.subr.bf16.mxu0 0
        %1241 = vmatpush2.bf16.xpose.msra.mxu0 0
        %1242 = vmatprep.subr.bf16.mxu0 0
        %1243 = vmatpush2.bf16.xpose.msra.mxu0 0
        %1244 = vmatprep.subr.bf16.mxu0 0
        %1245 = vmatpush2.bf16.xpose.msra.mxu0 0
        %1246 = vmatprep.subr.bf16.mxu0 0
        %1247 = vmatpush2.bf16.xpose.msra.mxu0 0
        %1248 = vmatprep.subr.bf16.mxu0 0
        %1249 = vmatpush2.bf16.xpose.msra.mxu0 0
        %1250 = vmatprep.mubr.bf16.mxu0 0
        %1251 = vmatmul.mubr.bf16.gmra.mxu0 %v1213
        %v1252 = vpop.f32.mrf.mxu0
        %v1253 = vadd.f32 0.0, %v1252
        %v1254 = vpop.f32.mrf.mxu0
        %v1255 = vpop.f32.mrf.mxu0
        %v1256 = vpop.f32.mrf.mxu0
        %1257 = vdwg.mxu0
        %v1259 = vsel %vm1119, %v1114, 0
        %v1262 = vsel %vm1119, %v1118, 0
        %1264 = vmatprep.subr.bf16.mxu0 0
        %1265 = vmatpush1.bf16.xpose.msra.mxu0 0
        %1266 = vmatprep.subr.bf16.mxu0 0
        %1267 = vmatpush1.bf16.xpose.msra.mxu0 0
        %1268 = vmatprep.subr.bf16.mxu0 0
        %1269 = vmatpush1.bf16.xpose.msra.mxu0 0
        %1270 = vmatprep.subr.bf16.mxu0 0
        %1271 = vmatpush1.bf16.xpose.msra.mxu0 0
        %1272 = vmatprep.subr.bf16.mxu0 0
        %1273 = vmatpush1.bf16.xpose.msra.mxu0 0
        %1274 = vmatprep.subr.bf16.mxu0 0
        %1275 = vmatpush1.bf16.xpose.msra.mxu0 0
        %1276 = vmatprep.subr.bf16.mxu0 0
        %1277 = vmatpush1.bf16.xpose.msra.mxu0 0
        %1278 = vmatprep.subr.bf16.mxu0 0
        %1279 = vmatpush1.bf16.xpose.msra.mxu0 %v1262
        %1280 = vmatprep.subr.bf16.mxu0 0
        %1281 = vmatpush2.bf16.xpose.msra.mxu0 0
        %1282 = vmatprep.subr.bf16.mxu0 0
        %1283 = vmatpush2.bf16.xpose.msra.mxu0 0
        %1284 = vmatprep.subr.bf16.mxu0 0
        %1285 = vmatpush2.bf16.xpose.msra.mxu0 0
        %1286 = vmatprep.subr.bf16.mxu0 0
        %1287 = vmatpush2.bf16.xpose.msra.mxu0 0
        %1288 = vmatprep.subr.bf16.mxu0 0
        %1289 = vmatpush2.bf16.xpose.msra.mxu0 0
        %1290 = vmatprep.subr.bf16.mxu0 0
        %1291 = vmatpush2.bf16.xpose.msra.mxu0 0
        %1292 = vmatprep.subr.bf16.mxu0 0
        %1293 = vmatpush2.bf16.xpose.msra.mxu0 0
        %1294 = vmatprep.subr.bf16.mxu0 0
        %1295 = vmatpush2.bf16.xpose.msra.mxu0 0
        %1296 = vmatprep.mubr.bf16.mxu0 0
        %1297 = vmatmul.mubr.bf16.gmra.mxu0 %v1259
        %v1298 = vpop.f32.mrf.mxu0
        %v1299 = vadd.f32 0.0, %v1298
        %v1300 = vpop.f32.mrf.mxu0
        %v1301 = vpop.f32.mrf.mxu0
        %v1302 = vpop.f32.mrf.mxu0
        %1303 = vdwg.mxu0
        %v1304 = vsel %vm1119, %v1161, -inf
        %1305 = vmax.xlane.f32.xlu0 %v1304
        %v1306 = vpop.xlane.xlu0 %1305
        %v1307 = vsel %vm1119, %v1207, -inf
        %1308 = vmax.xlane.f32.xlu0 %v1307
        %v1309 = vpop.xlane.xlu0 %1308
        %v1310 = vsel %vm1119, %v1253, -inf
        %1311 = vmax.xlane.f32.xlu0 %v1310
        %v1312 = vpop.xlane.xlu0 %1311
        %v1313 = vsel %vm1119, %v1299, -inf
        %1314 = vmax.xlane.f32.xlu0 %v1313
        %v1315 = vpop.xlane.xlu0 %1314
        %v1316 = vsub.f32 %v1161, %v1306
        %v1317 = vsub.f32 %v1207, %v1309
        %v1318 = vsub.f32 %v1253, %v1312
        %v1319 = vsub.f32 %v1299, %v1315
        %v1320 = vmul.f32 %v1316, 1.442695
        %v1321 = vpow.pop %v1320
        %v1322 = vmul.f32 %v1317, 1.442695
        %v1323 = vpow.pop %v1322
        %v1324 = vmul.f32 %v1318, 1.442695
        %v1325 = vpow.pop %v1324
        %v1326 = vmul.f32 %v1319, 1.442695
        %v1327 = vpow.pop %v1326
        %v1328 = vsel %vm1119, %v1321, 0.0
        %1329 = vadd.xlane.f32.xlu0 %v1328
        %v1330 = vpop.xlane.xlu0 %1329
        %v1331 = vsel %vm1119, %v1323, 0.0
        %1332 = vadd.xlane.f32.xlu0 %v1331
        %v1333 = vpop.xlane.xlu0 %1332
        %v1334 = vsel %vm1119, %v1325, 0.0
        %1335 = vadd.xlane.f32.xlu0 %v1334
        %v1336 = vpop.xlane.xlu0 %1335
        %v1337 = vsel %vm1119, %v1327, 0.0
        %1338 = vadd.xlane.f32.xlu0 %v1337
        %v1339 = vpop.xlane.xlu0 %1338
        %v1340 = vrcp.pop %v1330
        %v1341 = vrcp.pop %v1333
        %v1342 = vrcp.pop %v1336
        %v1343 = vrcp.pop %v1339
        %v1344 = vmul.f32 %v1321, %v1340
        %v1345 = vmul.f32 %v1323, %v1341
        %v1346 = vmul.f32 %v1325, %v1342
        %v1347 = vmul.f32 %v1327, %v1343
        %v1348 = vpack.c.bf16 %v1344, %v1344
        %v1349 = vpack.c.bf16 %v1345, %v1345
        %v1350 = vpack.c.bf16 %v1346, %v1346
        %v1351 = vpack.c.bf16 %v1347, %v1347
        %v1352 = vld [vmem:[#allocation3] sm:$0xf]
        %v1353 = vld [vmem:[#allocation3 + $0x4] sm:$0xf]
        %v1354 = vld [vmem:[#allocation3 + $0x8] sm:$0xf]
        %v1355 = vld [vmem:[#allocation3 + $0xc] sm:$0xf]
        %v1357 = vsel %vm1119, %v1348, 0
        %vm1359 = vcmask 1043456
        %v1361 = vsel %vm1359, %v1352, 0
        %1363 = vmatprep.subr.bf16.mxu0 0
        %1364 = vmatpush1.bf16.msra.mxu0 0
        %1365 = vmatprep.subr.bf16.mxu0 0
        %1366 = vmatpush1.bf16.msra.mxu0 0
        %1367 = vmatprep.subr.bf16.mxu0 0
        %1368 = vmatpush1.bf16.msra.mxu0 0
        %1369 = vmatprep.subr.bf16.mxu0 0
        %1370 = vmatpush1.bf16.msra.mxu0 0
        %1371 = vmatprep.subr.bf16.mxu0 0
        %1372 = vmatpush1.bf16.msra.mxu0 0
        %1373 = vmatprep.subr.bf16.mxu0 0
        %1374 = vmatpush1.bf16.msra.mxu0 0
        %1375 = vmatprep.subr.bf16.mxu0 0
        %1376 = vmatpush1.bf16.msra.mxu0 0
        %1377 = vmatprep.subr.bf16.mxu0 0
        %1378 = vmatpush1.bf16.msra.mxu0 %v1361
        %1379 = vmatprep.subr.bf16.mxu0 0
        %1380 = vmatpush2.bf16.msra.mxu0 0
        %1381 = vmatprep.subr.bf16.mxu0 0
        %1382 = vmatpush2.bf16.msra.mxu0 0
        %1383 = vmatprep.subr.bf16.mxu0 0
        %1384 = vmatpush2.bf16.msra.mxu0 0
        %1385 = vmatprep.subr.bf16.mxu0 0
        %1386 = vmatpush2.bf16.msra.mxu0 0
        %1387 = vmatprep.subr.bf16.mxu0 0
        %1388 = vmatpush2.bf16.msra.mxu0 0
        %1389 = vmatprep.subr.bf16.mxu0 0
        %1390 = vmatpush2.bf16.msra.mxu0 0
        %1391 = vmatprep.subr.bf16.mxu0 0
        %1392 = vmatpush2.bf16.msra.mxu0 0
        %1393 = vmatprep.subr.bf16.mxu0 0
        %1394 = vmatpush2.bf16.msra.mxu0 0
        %1395 = vmatprep.mubr.bf16.mxu0 0
        %1396 = vmatmul.mubr.bf16.gmra.mxu0 %v1357
        %v1397 = vpop.f32.mrf.mxu0
        %v1398 = vadd.f32 0.0, %v1397
        %v1399 = vpop.f32.mrf.mxu0
        %v1400 = vpop.f32.mrf.mxu0
        %v1401 = vpop.f32.mrf.mxu0
        %1402 = vdwg.mxu0
        %v1404 = vsel %vm1119, %v1349, 0
        %v1407 = vsel %vm1359, %v1353, 0
        %1409 = vmatprep.subr.bf16.mxu0 0
        %1410 = vmatpush1.bf16.msra.mxu0 0
        %1411 = vmatprep.subr.bf16.mxu0 0
        %1412 = vmatpush1.bf16.msra.mxu0 0
        %1413 = vmatprep.subr.bf16.mxu0 0
        %1414 = vmatpush1.bf16.msra.mxu0 0
        %1415 = vmatprep.subr.bf16.mxu0 0
        %1416 = vmatpush1.bf16.msra.mxu0 0
        %1417 = vmatprep.subr.bf16.mxu0 0
        %1418 = vmatpush1.bf16.msra.mxu0 0
        %1419 = vmatprep.subr.bf16.mxu0 0
        %1420 = vmatpush1.bf16.msra.mxu0 0
        %1421 = vmatprep.subr.bf16.mxu0 0
        %1422 = vmatpush1.bf16.msra.mxu0 0
        %1423 = vmatprep.subr.bf16.mxu0 0
        %1424 = vmatpush1.bf16.msra.mxu0 %v1407
        %1425 = vmatprep.subr.bf16.mxu0 0
        %1426 = vmatpush2.bf16.msra.mxu0 0
        %1427 = vmatprep.subr.bf16.mxu0 0
        %1428 = vmatpush2.bf16.msra.mxu0 0
        %1429 = vmatprep.subr.bf16.mxu0 0
        %1430 = vmatpush2.bf16.msra.mxu0 0
        %1431 = vmatprep.subr.bf16.mxu0 0
        %1432 = vmatpush2.bf16.msra.mxu0 0
        %1433 = vmatprep.subr.bf16.mxu0 0
        %1434 = vmatpush2.bf16.msra.mxu0 0
        %1435 = vmatprep.subr.bf16.mxu0 0
        %1436 = vmatpush2.bf16.msra.mxu0 0
        %1437 = vmatprep.subr.bf16.mxu0 0
        %1438 = vmatpush2.bf16.msra.mxu0 0
        %1439 = vmatprep.subr.bf16.mxu0 0
        %1440 = vmatpush2.bf16.msra.mxu0 0
        %1441 = vmatprep.mubr.bf16.mxu0 0
        %1442 = vmatmul.mubr.bf16.gmra.mxu0 %v1404
        %v1443 = vpop.f32.mrf.mxu0
        %v1444 = vadd.f32 0.0, %v1443
        %v1445 = vpop.f32.mrf.mxu0
        %v1446 = vpop.f32.mrf.mxu0
        %v1447 = vpop.f32.mrf.mxu0
        %1448 = vdwg.mxu0
        %v1450 = vsel %vm1119, %v1350, 0
        %v1453 = vsel %vm1359, %v1354, 0
        %1455 = vmatprep.subr.bf16.mxu0 0
        %1456 = vmatpush1.bf16.msra.mxu0 0
        %1457 = vmatprep.subr.bf16.mxu0 0
        %1458 = vmatpush1.bf16.msra.mxu0 0
        %1459 = vmatprep.subr.bf16.mxu0 0
        %1460 = vmatpush1.bf16.msra.mxu0 0
        %1461 = vmatprep.subr.bf16.mxu0 0
        %1462 = vmatpush1.bf16.msra.mxu0 0
        %1463 = vmatprep.subr.bf16.mxu0 0
        %1464 = vmatpush1.bf16.msra.mxu0 0
        %1465 = vmatprep.subr.bf16.mxu0 0
        %1466 = vmatpush1.bf16.msra.mxu0 0
        %1467 = vmatprep.subr.bf16.mxu0 0
        %1468 = vmatpush1.bf16.msra.mxu0 0
        %1469 = vmatprep.subr.bf16.mxu0 0
        %1470 = vmatpush1.bf16.msra.mxu0 %v1453
        %1471 = vmatprep.subr.bf16.mxu0 0
        %1472 = vmatpush2.bf16.msra.mxu0 0
        %1473 = vmatprep.subr.bf16.mxu0 0
        %1474 = vmatpush2.bf16.msra.mxu0 0
        %1475 = vmatprep.subr.bf16.mxu0 0
        %1476 = vmatpush2.bf16.msra.mxu0 0
        %1477 = vmatprep.subr.bf16.mxu0 0
        %1478 = vmatpush2.bf16.msra.mxu0 0
        %1479 = vmatprep.subr.bf16.mxu0 0
        %1480 = vmatpush2.bf16.msra.mxu0 0
        %1481 = vmatprep.subr.bf16.mxu0 0
        %1482 = vmatpush2.bf16.msra.mxu0 0
        %1483 = vmatprep.subr.bf16.mxu0 0
        %1484 = vmatpush2.bf16.msra.mxu0 0
        %1485 = vmatprep.subr.bf16.mxu0 0
        %1486 = vmatpush2.bf16.msra.mxu0 0
        %1487 = vmatprep.mubr.bf16.mxu0 0
        %1488 = vmatmul.mubr.bf16.gmra.mxu0 %v1450
        %v1489 = vpop.f32.mrf.mxu0
        %v1490 = vadd.f32 0.0, %v1489
        %v1491 = vpop.f32.mrf.mxu0
        %v1492 = vpop.f32.mrf.mxu0
        %v1493 = vpop.f32.mrf.mxu0
        %1494 = vdwg.mxu0
        %v1496 = vsel %vm1119, %v1351, 0
        %v1499 = vsel %vm1359, %v1355, 0
        %1501 = vmatprep.subr.bf16.mxu0 0
        %1502 = vmatpush1.bf16.msra.mxu0 0
        %1503 = vmatprep.subr.bf16.mxu0 0
        %1504 = vmatpush1.bf16.msra.mxu0 0
        %1505 = vmatprep.subr.bf16.mxu0 0
        %1506 = vmatpush1.bf16.msra.mxu0 0
        %1507 = vmatprep.subr.bf16.mxu0 0
        %1508 = vmatpush1.bf16.msra.mxu0 0
        %1509 = vmatprep.subr.bf16.mxu0 0
        %1510 = vmatpush1.bf16.msra.mxu0 0
        %1511 = vmatprep.subr.bf16.mxu0 0
        %1512 = vmatpush1.bf16.msra.mxu0 0
        %1513 = vmatprep.subr.bf16.mxu0 0
        %1514 = vmatpush1.bf16.msra.mxu0 0
        %1515 = vmatprep.subr.bf16.mxu0 0
        %1516 = vmatpush1.bf16.msra.mxu0 %v1499
        %1517 = vmatprep.subr.bf16.mxu0 0
        %1518 = vmatpush2.bf16.msra.mxu0 0
        %1519 = vmatprep.subr.bf16.mxu0 0
        %1520 = vmatpush2.bf16.msra.mxu0 0
        %1521 = vmatprep.subr.bf16.mxu0 0
        %1522 = vmatpush2.bf16.msra.mxu0 0
        %1523 = vmatprep.subr.bf16.mxu0 0
        %1524 = vmatpush2.bf16.msra.mxu0 0
        %1525 = vmatprep.subr.bf16.mxu0 0
        %1526 = vmatpush2.bf16.msra.mxu0 0
        %1527 = vmatprep.subr.bf16.mxu0 0
        %1528 = vmatpush2.bf16.msra.mxu0 0
        %1529 = vmatprep.subr.bf16.mxu0 0
        %1530 = vmatpush2.bf16.msra.mxu0 0
        %1531 = vmatprep.subr.bf16.mxu0 0
        %1532 = vmatpush2.bf16.msra.mxu0 0
        %1533 = vmatprep.mubr.bf16.mxu0 0
        %1534 = vmatmul.mubr.bf16.gmra.mxu0 %v1496
        %v1535 = vpop.f32.mrf.mxu0
        %v1536 = vadd.f32 0.0, %v1535
        %v1537 = vpop.f32.mrf.mxu0
        %v1538 = vpop.f32.mrf.mxu0
        %v1539 = vpop.f32.mrf.mxu0
        %1540 = vdwg.mxu0
        %v1541 = vcombine.low %v1398, %v1490
        %v1542 = vcombine.high %v1398, %v1490
        %v1544 = vunpack.c.l.s4 1983009808
        %v1545 = vunpack.c.0.s8 %v1544
        %v1546 = vlaneseq
        %v1547 = vshrl.u32 %v1546, 7
        %v1548 = vsub.s32 %v1545, %v1547
        %v1549 = vrot.slane %v1541, %v1548
        %v1551 = vunpack.c.l.s4 1983009808
        %v1552 = vunpack.c.0.s8 %v1551
        %v1553 = vlaneseq
        %v1554 = vshrl.u32 %v1553, 7
        %v1555 = vsub.s32 %v1552, %v1554
        %v1556 = vrot.slane %v1542, %v1555
        %v1557 = vcombine.low %v1444, %v1536
        %v1558 = vcombine.high %v1444, %v1536
        %v1560 = vunpack.c.l.s4 1983009808
        %v1561 = vunpack.c.0.s8 %v1560
        %v1562 = vlaneseq
        %v1563 = vshrl.u32 %v1562, 7
        %v1564 = vsub.s32 %v1561, %v1563
        %v1565 = vrot.slane %v1557, %v1564
        %v1567 = vunpack.c.l.s4 1983009808
        %v1568 = vunpack.c.0.s8 %v1567
        %v1569 = vlaneseq
        %v1570 = vshrl.u32 %v1569, 7
        %v1571 = vsub.s32 %v1568, %v1570
        %v1572 = vrot.slane %v1558, %v1571
        %v1573 = vcombine.low %v1549, %v1565
        %v1574 = vcombine.high %v1549, %v1565
        %v1576 = vunpack.c.l.s4 1934713408
        %v1577 = vunpack.c.0.s8 %v1576
        %v1578 = vlaneseq
        %v1579 = vshrl.u32 %v1578, 7
        %v1580 = vsub.s32 %v1577, %v1579
        %v1581 = vrot.slane %v1573, %v1580
        %v1583 = vunpack.c.l.s4 1934713408
        %v1584 = vunpack.c.0.s8 %v1583
        %v1585 = vlaneseq
        %v1586 = vshrl.u32 %v1585, 7
        %v1587 = vsub.s32 %v1584, %v1586
        %v1588 = vrot.slane %v1574, %v1587
        %v1589 = vcombine.low %v1556, %v1572
        %v1590 = vcombine.high %v1556, %v1572
        %v1592 = vunpack.c.l.s4 1934713408
        %v1593 = vunpack.c.0.s8 %v1592
        %v1594 = vlaneseq
        %v1595 = vshrl.u32 %v1594, 7
        %v1596 = vsub.s32 %v1593, %v1595
        %v1597 = vrot.slane %v1589, %v1596
        %v1599 = vunpack.c.l.s4 1934713408
        %v1600 = vunpack.c.0.s8 %v1599
        %v1601 = vlaneseq
        %v1602 = vshrl.u32 %v1601, 7
        %v1603 = vsub.s32 %v1600, %v1602
        %v1604 = vrot.slane %v1590, %v1603
        %v1605 = vcombine.high %v1581, 0.0
        %v1606 = vcombine.high %v1588, 0.0
        %v1607 = vcombine.high %v1597, 0.0
        %v1608 = vcombine.high %v1604, 0.0
        %v1609 = vcombine.low %v1581, %v1588
        %v1611 = vunpack.c.l.s4 1983009808
        %v1612 = vunpack.c.0.s8 %v1611
        %v1613 = vlaneseq
        %v1614 = vshrl.u32 %v1613, 7
        %v1615 = vsub.s32 %v1612, %v1614
        %v1616 = vrot.slane %v1609, %v1615
        %v1617 = vcombine.low %v1605, %v1606
        %v1619 = vunpack.c.l.s4 1983009808
        %v1620 = vunpack.c.0.s8 %v1619
        %v1621 = vlaneseq
        %v1622 = vshrl.u32 %v1621, 7
        %v1623 = vsub.s32 %v1620, %v1622
        %v1624 = vrot.slane %v1617, %v1623
        %v1625 = vcombine.low %v1597, %v1604
        %v1627 = vunpack.c.l.s4 1983009808
        %v1628 = vunpack.c.0.s8 %v1627
        %v1629 = vlaneseq
        %v1630 = vshrl.u32 %v1629, 7
        %v1631 = vsub.s32 %v1628, %v1630
        %v1632 = vrot.slane %v1625, %v1631
        %v1633 = vcombine.low %v1607, %v1608
        %v1635 = vunpack.c.l.s4 1983009808
        %v1636 = vunpack.c.0.s8 %v1635
        %v1637 = vlaneseq
        %v1638 = vshrl.u32 %v1637, 7
        %v1639 = vsub.s32 %v1636, %v1638
        %v1640 = vrot.slane %v1633, %v1639
        %v1641 = vcombine.low %v1616, %v1624
        %v1642 = vcombine.high %v1616, %v1624
        %v1644 = vunpack.c.l.s4 1934713408
        %v1645 = vunpack.c.0.s8 %v1644
        %v1646 = vlaneseq
        %v1647 = vshrl.u32 %v1646, 7
        %v1648 = vsub.s32 %v1645, %v1647
        %v1649 = vrot.slane %v1641, %v1648
        %v1651 = vunpack.c.l.s4 1934713408
        %v1652 = vunpack.c.0.s8 %v1651
        %v1653 = vlaneseq
        %v1654 = vshrl.u32 %v1653, 7
        %v1655 = vsub.s32 %v1652, %v1654
        %v1656 = vrot.slane %v1642, %v1655
        %v1657 = vcombine.low %v1632, %v1640
        %v1658 = vcombine.high %v1632, %v1640
        %v1660 = vunpack.c.l.s4 1934713408
        %v1661 = vunpack.c.0.s8 %v1660
        %v1662 = vlaneseq
        %v1663 = vshrl.u32 %v1662, 7
        %v1664 = vsub.s32 %v1661, %v1663
        %v1665 = vrot.slane %v1657, %v1664
        %v1667 = vunpack.c.l.s4 1934713408
        %v1668 = vunpack.c.0.s8 %v1667
        %v1669 = vlaneseq
        %v1670 = vshrl.u32 %v1669, 7
        %v1671 = vsub.s32 %v1668, %v1670
        %v1672 = vrot.slane %v1658, %v1671
        %v1673 = vcombine.low %v1649, %v1665
        %v1674 = vcombine.high %v1649, %v1665
        %v1675 = vcombine.low %v1656, %v1672
        %v1676 = vcombine.high %v1656, %v1672
        %1678 = vrot.lane.b32.xlu0 %v1674, 8
        %v1679 = vpop.permute.xlu0 %1678
        %1682 = vrot.lane.b32.xlu0 %v1675, 16
        %v1683 = vpop.permute.xlu0 %1682
        %1686 = vrot.lane.b32.xlu0 %v1676, 24
        %v1687 = vpop.permute.xlu0 %1686
        %v1689 = vsel %vm1119, %v1673, %v1679
        %vm1690 = vcmask 130048
        %v1691 = vsel %vm1690, %v1689, %v1683
        %vm1692 = vcmask 195584
        %v1693 = vsel %vm1692, %v1691, %v1687
        %v1694 = vpack.c.bf16 %v1693, %v1693
        %v1695 = vld [vmem:[#allocation8] sm:$0xf]
        %v1696 = vld [vmem:[#allocation8 + $0x4] sm:$0xf]
        %v1697 = vld [vmem:[#allocation8 + $0x8] sm:$0xf]
        %v1698 = vld [vmem:[#allocation8 + $0xc] sm:$0xf]
        %v1699 = vlaneseq
        %v1700 = vshrl.u32 %v1699, 7
        %v1701 = vsub.s32 5, %v1700
        %v1702 = vrot.slane %v426, %v1701
        %v1707 = vunpack.c.l.b16 %v1695
        %v1708 = vunpack.c.l.b16 %v1696
        %v1709 = vunpack.c.l.b16 %v1697
        %v1710 = vunpack.c.l.b16 %v1698
        %v1711 = vpack.c.b16 %v1708, %v1707
        %v1712 = vpack.c.b16 %v1710, %v1709
        %v1716 = vsel %vm917, %v1694, 0
        %1718 = vmatprep.subr.bf16.mxu0 0
        %1719 = vmatpush1.bf16.msra.mxu0 0
        %1720 = vmatprep.subr.bf16.mxu0 0
        %1721 = vmatpush1.bf16.msra.mxu0 0
        %1722 = vmatprep.subr.bf16.mxu0 0
        %1723 = vmatpush1.bf16.msra.mxu0 0
        %1724 = vmatprep.subr.bf16.mxu0 0
        %1725 = vmatpush1.bf16.msra.mxu0 0
        %1726 = vmatprep.subr.bf16.mxu0 0
        %1727 = vmatpush1.bf16.msra.mxu0 0
        %1728 = vmatprep.subr.bf16.mxu0 0
        %1729 = vmatpush1.bf16.msra.mxu0 0
        %1730 = vmatprep.subr.bf16.mxu0 0
        %1731 = vmatpush1.bf16.msra.mxu0 %v1712
        %1732 = vmatprep.subr.bf16.mxu0 0
        %1733 = vmatpush1.bf16.msra.mxu0 %v1711
        %1734 = vmatprep.subr.bf16.mxu0 0
        %1735 = vmatpush2.bf16.msra.mxu0 0
        %1736 = vmatprep.subr.bf16.mxu0 0
        %1737 = vmatpush2.bf16.msra.mxu0 0
        %1738 = vmatprep.subr.bf16.mxu0 0
        %1739 = vmatpush2.bf16.msra.mxu0 0
        %1740 = vmatprep.subr.bf16.mxu0 0
        %1741 = vmatpush2.bf16.msra.mxu0 0
        %1742 = vmatprep.subr.bf16.mxu0 0
        %1743 = vmatpush2.bf16.msra.mxu0 0
        %1744 = vmatprep.subr.bf16.mxu0 0
        %1745 = vmatpush2.bf16.msra.mxu0 0
        %1746 = vmatprep.subr.bf16.mxu0 0
        %1747 = vmatpush2.bf16.msra.mxu0 0
        %1748 = vmatprep.subr.bf16.mxu0 0
        %1749 = vmatpush2.bf16.msra.mxu0 0
        %1750 = vmatprep.mubr.bf16.mxu0 0
        %1751 = vmatmul.mubr.bf16.gmra.mxu0 %v1716
        %v1752 = vpop.f32.mrf.mxu0
        %v1753 = vadd.f32 %v1702, %v1752
        %v1754 = vpop.f32.mrf.mxu0
        %v1755 = vpop.f32.mrf.mxu0
        %v1756 = vpop.f32.mrf.mxu0
        %1757 = vdwg.mxu0
        %v1758 = vadd.f32 %v882, %v1753
        %v1759 = vstv %s425
        %v1760 = vmul.f32 %v1759, %v1758
        %v1761 = vtanh.pop %v1760
        %v1762 = vlaneseq
        %v1763 = vshrl.u32 %v1762, 7
        %v1764 = vsub.s32 6, %v1763
        %v1765 = vrot.slane %v426, %v1764
        %v1766 = vmul.f32 %v1765, %v1761
        %v1767 = vlaneseq
        %v1768 = vshrl.u32 %v1767, 7
        %v1769 = vsub.s32 7, %v1768
        %v1770 = vrot.slane %v426, %v1769
        %v1771 = vadd.f32 %v1766, %v1770
        %v1772 = vpack.c.bf16 %v1771, %v1771
        %v1773 = vld [vmem:[#allocation9] sm:$0xf]
        %v1774 = vld [vmem:[#allocation9 + $0x4] sm:$0xf]
        %v1775 = vld [vmem:[#allocation9 + $0x8] sm:$0xf]
        %v1776 = vld [vmem:[#allocation9 + $0xc] sm:$0xf]
        %v1777 = vld [vmem:[#allocation11] sm:$0x1]
        %v1779 = vlaneseq
        %v1780 = vshrl.u32 %v1779, 7
        %v1781 = vsub.s32 0, %v1780
        %v1782 = vrot.slane %v1777, %v1781
        %v1788 = vunpack.c.l.b16 %v1773
        %v1789 = vunpack.c.l.b16 %v1774
        %v1790 = vunpack.c.l.b16 %v1775
        %v1791 = vunpack.c.l.b16 %v1776
        %v1792 = vpack.c.b16 %v1789, %v1788
        %v1793 = vpack.c.b16 %v1791, %v1790
        %v1797 = vsel %vm917, %v1772, 0
        %1799 = vmatprep.subr.bf16.mxu0 0
        %1800 = vmatpush1.bf16.msra.mxu0 0
        %1801 = vmatprep.subr.bf16.mxu0 0
        %1802 = vmatpush1.bf16.msra.mxu0 0
        %1803 = vmatprep.subr.bf16.mxu0 0
        %1804 = vmatpush1.bf16.msra.mxu0 0
        %1805 = vmatprep.subr.bf16.mxu0 0
        %1806 = vmatpush1.bf16.msra.mxu0 0
        %1807 = vmatprep.subr.bf16.mxu0 0
        %1808 = vmatpush1.bf16.msra.mxu0 0
        %1809 = vmatprep.subr.bf16.mxu0 0
        %1810 = vmatpush1.bf16.msra.mxu0 0
        %1811 = vmatprep.subr.bf16.mxu0 0
        %1812 = vmatpush1.bf16.msra.mxu0 %v1793
        %1813 = vmatprep.subr.bf16.mxu0 0
        %1814 = vmatpush1.bf16.msra.mxu0 %v1792
        %1815 = vmatprep.subr.bf16.mxu0 0
        %1816 = vmatpush2.bf16.msra.mxu0 0
        %1817 = vmatprep.subr.bf16.mxu0 0
        %1818 = vmatpush2.bf16.msra.mxu0 0
        %1819 = vmatprep.subr.bf16.mxu0 0
        %1820 = vmatpush2.bf16.msra.mxu0 0
        %1821 = vmatprep.subr.bf16.mxu0 0
        %1822 = vmatpush2.bf16.msra.mxu0 0
        %1823 = vmatprep.subr.bf16.mxu0 0
        %1824 = vmatpush2.bf16.msra.mxu0 0
        %1825 = vmatprep.subr.bf16.mxu0 0
        %1826 = vmatpush2.bf16.msra.mxu0 0
        %1827 = vmatprep.subr.bf16.mxu0 0
        %1828 = vmatpush2.bf16.msra.mxu0 0
        %1829 = vmatprep.subr.bf16.mxu0 0
        %1830 = vmatpush2.bf16.msra.mxu0 0
        %1831 = vmatprep.mubr.bf16.mxu0 0
        %1832 = vmatmul.mubr.bf16.gmra.mxu0 %v1797
        %v1833 = vpop.f32.mrf.mxu0
        %v1834 = vadd.f32 %v1782, %v1833
        %v1835 = vpop.f32.mrf.mxu0
        %v1836 = vpop.f32.mrf.mxu0
        %v1837 = vpop.f32.mrf.mxu0
        %1838 = vdwg.mxu0
        %v1839 = vmul.f32 %v1834, 0.5
        %v1840 = vmul.f32 %v1834, 0.70710677
        %v1841 = verf.f32.pop %v1840
        %v1842 = vadd.f32 %v1841, 1.0
        %v1843 = vmul.f32 %v1839, %v1842
        %v1844 = vpack.c.bf16 %v1843, %v1843
        %v1845 = vld [vmem:[%s9] sm:$0xf]
        %v1846 = vld [vmem:[%s9 + $0x4] sm:$0xf]
        %v1847 = vld [vmem:[%s9 + $0x8] sm:$0xf]
        %v1848 = vld [vmem:[%s9 + $0xc] sm:$0xf]
        %v1849 = vld [vmem:[%s9 + $0x10] sm:$0xf]
        %v1850 = vld [vmem:[%s9 + $0x14] sm:$0xf]
        %v1851 = vld [vmem:[%s9 + $0x18] sm:$0xf]
        %v1852 = vld [vmem:[%s9 + $0x1c] sm:$0xf]
        %v1853 = vld [vmem:[%s9 + $0x20] sm:$0xf]
        %v1854 = vld [vmem:[%s9 + $0x24] sm:$0xf]
        %v1855 = vld [vmem:[%s9 + $0x28] sm:$0xf]
        %v1856 = vld [vmem:[%s9 + $0x2c] sm:$0xf]
        %v1857 = vld [vmem:[%s9 + $0x30] sm:$0xf]
        %v1858 = vld [vmem:[%s9 + $0x34] sm:$0xf]
        %v1859 = vld [vmem:[%s9 + $0x38] sm:$0xf]
        %v1860 = vld [vmem:[%s9 + $0x3c] sm:$0xf]
        %v1861 = vlaneseq
        %v1862 = vshrl.u32 %v1861, 7
        %v1863 = vsub.s32 0, %v1862
        %v1864 = vrot.slane %v427, %v1863
        %v1881 = vunpack.c.l.b16 %v1845
        %v1882 = vunpack.c.l.b16 %v1846
        %v1883 = vunpack.c.l.b16 %v1847
        %v1884 = vunpack.c.l.b16 %v1848
        %v1885 = vunpack.c.l.b16 %v1849
        %v1886 = vunpack.c.l.b16 %v1850
        %v1887 = vunpack.c.l.b16 %v1851
        %v1888 = vunpack.c.l.b16 %v1852
        %v1889 = vunpack.c.l.b16 %v1853
        %v1890 = vunpack.c.l.b16 %v1854
        %v1891 = vunpack.c.l.b16 %v1855
        %v1892 = vunpack.c.l.b16 %v1856
        %v1893 = vunpack.c.l.b16 %v1857
        %v1894 = vunpack.c.l.b16 %v1858
        %v1895 = vunpack.c.l.b16 %v1859
        %v1896 = vunpack.c.l.b16 %v1860
        %v1897 = vpack.c.b16 %v1882, %v1881
        %v1898 = vpack.c.b16 %v1884, %v1883
        %v1899 = vpack.c.b16 %v1886, %v1885
        %v1900 = vpack.c.b16 %v1888, %v1887
        %v1901 = vpack.c.b16 %v1890, %v1889
        %v1902 = vpack.c.b16 %v1892, %v1891
        %v1903 = vpack.c.b16 %v1894, %v1893
        %v1904 = vpack.c.b16 %v1896, %v1895
        %1913 = vmatprep.subr.bf16.mxu0 0
        %1914 = vmatpush1.bf16.msra.mxu0 %v1904
        %1915 = vmatprep.subr.bf16.mxu0 0
        %1916 = vmatpush1.bf16.msra.mxu0 %v1903
        %1917 = vmatprep.subr.bf16.mxu0 0
        %1918 = vmatpush1.bf16.msra.mxu0 %v1902
        %1919 = vmatprep.subr.bf16.mxu0 0
        %1920 = vmatpush1.bf16.msra.mxu0 %v1901
        %1921 = vmatprep.subr.bf16.mxu0 0
        %1922 = vmatpush1.bf16.msra.mxu0 %v1900
        %1923 = vmatprep.subr.bf16.mxu0 0
        %1924 = vmatpush1.bf16.msra.mxu0 %v1899
        %1925 = vmatprep.subr.bf16.mxu0 0
        %1926 = vmatpush1.bf16.msra.mxu0 %v1898
        %1927 = vmatprep.subr.bf16.mxu0 0
        %1928 = vmatpush1.bf16.msra.mxu0 %v1897
        %1929 = vmatprep.subr.bf16.mxu0 0
        %1930 = vmatpush2.bf16.msra.mxu0 0
        %1931 = vmatprep.subr.bf16.mxu0 0
        %1932 = vmatpush2.bf16.msra.mxu0 0
        %1933 = vmatprep.subr.bf16.mxu0 0
        %1934 = vmatpush2.bf16.msra.mxu0 0
        %1935 = vmatprep.subr.bf16.mxu0 0
        %1936 = vmatpush2.bf16.msra.mxu0 0
        %1937 = vmatprep.subr.bf16.mxu0 0
        %1938 = vmatpush2.bf16.msra.mxu0 0
        %1939 = vmatprep.subr.bf16.mxu0 0
        %1940 = vmatpush2.bf16.msra.mxu0 0
        %1941 = vmatprep.subr.bf16.mxu0 0
        %1942 = vmatpush2.bf16.msra.mxu0 0
        %1943 = vmatprep.subr.bf16.mxu0 0
        %1944 = vmatpush2.bf16.msra.mxu0 0
        %1945 = vmatprep.mubr.bf16.mxu0 0
        %1946 = vmatmul.mubr.bf16.gmra.mxu0 %v1844
        %v1947 = vpop.f32.mrf.mxu0
        %v1948 = vadd.f32 %v1864, %v1947
        %v1949 = vpop.f32.mrf.mxu0
        %v1950 = vpop.f32.mrf.mxu0
        %v1951 = vpop.f32.mrf.mxu0
        %1952 = vdwg.mxu0
        %v1953 = vadd.f32 %v1758, %v1948
        %1954 = vst.msk [vmem:[%s418] sm:$0xff] %vm917, %v1953
        %s1955 = sand.u32 %s264, 1
        %s1956 = scalar_lea.sflag [#allocation6], %s1955
        %s1957 = sand.u32 %s264, 1
        %s1958 = smul.addr %s1957, 8
        %s1959 = scalar_lea.vmem [#allocation12], %s1958
        // Predicated region
        $region81: #{tpu_custom_call.1} parent=59 // pred_check
          %p1960 = pneg %p274
        $region82: #{tpu_custom_call.1} parent=59 // pred_check_branch
          %1962 = sbr.rel (%p1960) target = $region84
        $region83: #{tpu_custom_call.1} parent=59 // pred_region
          %s1964 = ssub.s32 128, 128
          %1965 = vsyncadd %s1956, %s1964
          %s1966 = sadd.s32 %s32, %s31
          %s1967 = smul.addr %s1966, 128
          %s1968 = scalar_lea.hbm %s10, %s1967
          %s1970 = sshll.u32 %s1959, 4
          %s1971 = int_to_ptr.vmem [resolvable:$true] %s1970
          %1973 = dma.vmem_to_hbm [thread:$0]  %s1971, 128, %s1968, %s1956
        $region84: #{tpu_custom_call.1} parent=59 // pred_fallthru
          _
      $region60: #{tpu_custom_call.1} parent=5 // pred_fallthru
        _
      %p1974 = scmp.le.s32.totalorder 2, %s22
      // Predicated region
      $region85: #{tpu_custom_call.1} parent=5 // pred_check
        %p1975 = pneg %p1974
      $region86: #{tpu_custom_call.1} parent=5 // pred_check_branch
        %1977 = sbr.rel (%p1975) target = $region88
      $region87: #{tpu_custom_call.1} parent=5 // pred_region
        %s1978 = ssub.s32 %s22, 2
        // Predicated region
        $region89: #{tpu_custom_call.1} parent=87 // pred_check
          %p1979 = pneg %p280
        $region90: #{tpu_custom_call.1} parent=87 // pred_check_branch
          %1981 = sbr.rel (%p1979) target = $region92
        $region91: #{tpu_custom_call.1} parent=87 // pred_region
          %s1982 = sand.u32 %s265, 1
          %s1983 = scalar_lea.sflag [#allocation6], %s1982
          %s1984 = sand.u32 %s265, 1
          %s1985 = smul.addr %s1984, 8
          %s1986 = scalar_lea.vmem [#allocation12], %s1985
          %1987 = dma.done %s1983, 128
        $region92: #{tpu_custom_call.1} parent=87 // pred_fallthru
          _
      $region88: #{tpu_custom_call.1} parent=5 // pred_fallthru
        _
    $region6: #{tpu_custom_call.1} parent=1 // loop_footer
      %s26 = sadd.s32 1, %s22
    $region7: #{tpu_custom_call.1} parent=1 // loop_footer_branch
      %21 = sbr.rel target = $region3
    $region8: #{tpu_custom_call.1} parent=1 // loop_exit
      _
    %1988 = vsyncpa [#allocation5], 1
    %s1989 = scalar_lea.sflag [#allocation5], 1
    %1990 = vsyncpa %s1989, 1
    %1991 = vsyncpa [#allocation10], 1
    %1992 = vsyncpa [#allocation6], 1
    %s1993 = scalar_lea.sflag [#allocation6], 1
    %1994 = vsyncpa %s1993, 1
    %1995 = vsyncpa [#allocation7], 1
    %s1996 = scalar_lea.sflag [#allocation7], 1
    %1997 = vsyncpa %s1996, 1

</llo_original>
